<compile_context>
chip_gen: v7x
topology: tpu7x:2x2x1
jax: 0.10.0
libtpu: 0.0.40
codegen_flags: <defaults>
</compile_context>

<pallas_src>
import functools

import jax
import jax.numpy as jnp
from jax.experimental import pallas as pl
from jax.experimental.pallas import tpu as pltpu


def _cg_block_kernel(x_ref, w1_ref, rowp_ref, fc1_ref, fc2_ref, o_ref, *,
                     batch, height, width, dilation, n_half, hidden,
                     residual):
    """Single grid step = whole (small) batch, channels-major flat-spatial.

    x_ref   : (B, nIn, H*W)        input images
    w1_ref  : (n, nIn)             conv1x1 weight, BN1 scale folded in
    rowp_ref: (n, 24)              packed per-row params:
                                   [0:9]  depthwise 3x3 taps (BN2[:n] folded)
                                   [9:18] dilated taps       (BN2[n:] folded)
                                   [18] b1  [19] p1  [20] b2_loc [21] p2_loc
                                   [22] b2_sur [23] p2_sur
    fc1_ref : (hpad, nOut+1)       [FGlo fc1 weight | fc1 bias] (zero-padded)
    fc2_ref : (nOut, hidden+1)     [FGlo fc2 weight | fc2 bias]
    o_ref   : (B, nOut, H*W)       output images
    """
    hw = height * width
    f32 = jnp.float32
    bf16 = jnp.bfloat16
    n_out = 2 * n_half

    # ---- unpack packed per-row params (tiny, one-vreg slices) -------------
    rowp = rowp_ref[...]                                  # (n, 24)
    wloc = rowp[:, 0:9]
    wsur = rowp[:, 9:18]
    b1 = rowp[:, 18:19]
    p1 = rowp[:, 19:20]
    b2l = rowp[:, 20:21]
    p2l = rowp[:, 21:22]
    b2s = rowp[:, 22:23]
    p2s = rowp[:, 23:24]

    def tile(v):  # replicate per-channel params for the batch-stacked rows
        return jnp.concatenate([v] * batch, axis=0) if batch > 1 else v

    # ---- conv1x1 (+ folded BN1 scale) + BN1 shift + PReLU ------------------
    # One small MXU dot per image (bf16 operands, f32 accumulation); results
    # are stacked along the sublane axis -> (B*n, H*W).
    w1 = w1_ref[...].astype(bf16)                         # (n, nIn)
    ys = [jnp.dot(w1, x_ref[b].astype(bf16), preferred_element_type=f32)
          for b in range(batch)]
    y = jnp.concatenate(ys, axis=0) if batch > 1 else ys[0]
    y = y + tile(b1)
    y = jnp.where(y >= 0.0, y, tile(p1) * y)              # (B*n, H*W)
    rows = batch * n_half

    # ---- depthwise 3x3 convs (local d=1 and surround d=dilation) ----------
    # Zero-extend the flat spatial axis so every (dh, dw) tap window is an
    # in-bounds *static* slice; the zero extension provides the height-border
    # zeros, a per-dw column mask provides the width-border zeros (applied
    # once per column offset, skipped for dw == 0).
    margin = dilation * (width + 1)
    zpad = jnp.zeros((rows, margin), f32)
    ypad = jnp.concatenate([zpad, y, zpad], axis=1)       # (rows, HW+2*margin)
    col = jax.lax.broadcasted_iota(jnp.int32, (1, hw), 1) % width

    def depthwise(w9, d):
        w_t = tile(w9)                                    # (rows, 9)
        acc = jnp.zeros((rows, hw), f32)
        for kw in range(3):
            dw = (kw - 1) * d
            part = jnp.zeros((rows, hw), f32)
            for kh in range(3):
                dh = (kh - 1) * d
                start = margin + dh * width + dw
                tap = w_t[:, kh * 3 + kw:kh * 3 + kw + 1]  # (rows, 1)
                part = part + ypad[:, start:start + hw] * tap
            if dw > 0:
                part = jnp.where(col < width - dw, part, 0.0)
            elif dw < 0:
                part = jnp.where(col >= -dw, part, 0.0)
            acc = acc + part
        return acc

    loc = depthwise(wloc, 1)
    sur = depthwise(wsur, dilation)

    # ---- BN2 shift + PReLU (scale already folded into the taps) -----------
    loc = loc + tile(b2l)
    loc = jnp.where(loc >= 0.0, loc, tile(p2l) * loc)
    sur = sur + tile(b2s)
    sur = jnp.where(sur >= 0.0, sur, tile(p2s) * sur)

    # ---- FGlo + residual, per image ----------------------------------------
    fc1 = fc1_ref[...]                                    # (hpad, nOut+1)
    wfc1 = fc1[:, :n_out].astype(bf16)
    bfc1 = fc1[:, n_out:n_out + 1]
    fc2 = fc2_ref[...]                                    # (nOut, hidden+1)
    wfc2 = fc2[:, :hidden]
    bfc2 = fc2[:, hidden:hidden + 1]
    inv_hw = 1.0 / float(hw)

    for b in range(batch):
        joi = jnp.concatenate(
            [loc[b * n_half:(b + 1) * n_half],
             sur[b * n_half:(b + 1) * n_half]], axis=0)   # (nOut, H*W)
        # fc1 fused with the pool: mean_s(Wfc1 @ joi) == Wfc1 @ mean_s(joi).
        t1 = jnp.dot(wfc1, joi.astype(bf16), preferred_element_type=f32)
        h1 = jnp.sum(t1, axis=1, keepdims=True) * inv_hw + bfc1   # (hpad, 1)
        h1 = jnp.maximum(h1, 0.0)
        gate = bfc2                                       # (nOut, 1)
        for j in range(hidden):                           # hidden is tiny (2)
            gate = gate + wfc2[:, j:j + 1] * h1[j:j + 1, :]
        gate = 0.5 * (jnp.tanh(0.5 * gate) + 1.0)         # stable sigmoid
        out = joi * gate
        if residual:
            out = out + x_ref[b]                          # nIn == nOut
        o_ref[b] = out.astype(o_ref.dtype)


def context_guided_block(x, params, *, dilation_rate=2, add=True, eps=1e-3):
    """ContextGuidedBlock forward.  x: (N, nIn, H, W) float32, NCHW."""
    batch, c_in, height, width = x.shape
    w1 = params["w1"]                                     # (n, nIn, 1, 1)
    n_half = w1.shape[0]
    n_out = 2 * n_half
    hidden = params["wfc1"].shape[0]
    hpad = 8
    assert hidden <= hpad
    if add:
        assert c_in == n_out, "residual add requires nIn == nOut"
    hw = height * width
    assert hw % 128 == 0, "lane-dense layout requires H*W % 128 == 0"
    f32 = jnp.float32

    # -- Fold BatchNorm (inference mode) scales into the conv weights. ------
    a1 = params["bn1_gamma"] / jnp.sqrt(params["bn1_var"] + eps)
    b1 = params["bn1_beta"] - a1 * params["bn1_mean"]
    w1f = (a1[:, None] * w1.reshape(n_half, c_in)).astype(f32)

    a2 = params["bn2_gamma"] / jnp.sqrt(params["bn2_var"] + eps)
    b2 = params["bn2_beta"] - a2 * params["bn2_mean"]
    wlocf = a2[:n_half, None] * params["wloc"].reshape(n_half, 9)
    wsurf = a2[n_half:, None] * params["wsur"].reshape(n_half, 9)

    col = lambda v: v.astype(f32)[:, None]
    # Packed per-row operand: [wloc | wsur | b1 | p1 | b2_loc | p2_loc |
    #                          b2_sur | p2_sur]  -> (n_half, 24)
    row_pack = jnp.concatenate(
        [wlocf.astype(f32), wsurf.astype(f32),
         col(b1), col(params["prelu1"]),
         col(b2[:n_half]), col(params["prelu2"][:n_half]),
         col(b2[n_half:]), col(params["prelu2"][n_half:])], axis=1)

    # FGlo fc packs: fc1 padded to a full sublane tile so the pool-fused fc1
    # matmul is a clean (8, nOut) @ (nOut, H*W) contraction.
    fc1_pack = jnp.zeros((hpad, n_out + 1), f32)
    fc1_pack = fc1_pack.at[:hidden, :n_out].set(params["wfc1"].astype(f32))
    fc1_pack = fc1_pack.at[:hidden, n_out].set(params["bfc1"].astype(f32))
    fc2_pack = jnp.concatenate(
        [params["wfc2"].astype(f32), col(params["bfc2"])], axis=1)

    x_flat = x.reshape(batch, c_in, hw).astype(f32)       # free reshape

    kernel = functools.partial(
        _cg_block_kernel, batch=batch, height=height, width=width,
        dilation=dilation_rate, n_half=n_half, hidden=hidden, residual=add)

    def full(shape):
        return pl.BlockSpec(shape, lambda i, _s=shape: (0,) * len(_s))

    flops = (2 * batch * n_half * c_in * hw          # conv1x1
             + 2 * 2 * 9 * batch * n_half * hw       # two depthwise branches
             + 2 * batch * hpad * n_out * hw)        # pool-fused fc1
    bytes_accessed = 4 * (x_flat.size + batch * n_out * hw + w1f.size
                          + row_pack.size + fc1_pack.size + fc2_pack.size)

    out_flat = pl.pallas_call(
        kernel,
        out_shape=jax.ShapeDtypeStruct((batch, n_out, hw), x.dtype),
        grid=(1,),
        in_specs=[
            full((batch, c_in, hw)),
            full((n_half, c_in)),
            full((n_half, 24)),
            full((hpad, n_out + 1)),
            full((n_out, hidden + 1)),
        ],
        out_specs=full((batch, n_out, hw)),
        compiler_params=pltpu.CompilerParams(
            dimension_semantics=("arbitrary",),
            vmem_limit_bytes=32 * 1024 * 1024),
        cost_estimate=pl.CostEstimate(
            flops=int(flops), transcendentals=int(batch * n_out),
            bytes_accessed=int(bytes_accessed)),
    )(x_flat, w1f, row_pack, fc1_pack, fc2_pack)

    return out_flat.reshape(batch, n_out, height, width)


def _reference_forward(x, params, *, dilation_rate, add, eps=1e-3):
    """Plain-JAX reference with the same (inference-mode BN) semantics."""
    hp = jax.lax.Precision.HIGHEST
    dn = ("NCHW", "OIHW", "NCHW")
    d = dilation_rate
    n_half = params["w1"].shape[0]

    def bn(z, g, b, m, v):
        return ((z - m[None, :, None, None])
                / jnp.sqrt(v + eps)[None, :, None, None]
                * g[None, :, None, None] + b[None, :, None, None])

    def prelu(z, a):
        return jnp.where(z >= 0, z, a[None, :, None, None] * z)

    y = jax.lax.conv_general_dilated(x, params["w1"], (1, 1), "VALID",
                                     dimension_numbers=dn, precision=hp)
    y = prelu(bn(y, params["bn1_gamma"], params["bn1_beta"],
                 params["bn1_mean"], params["bn1_var"]), params["prelu1"])
    loc = jax.lax.conv_general_dilated(
        y, params["wloc"], (1, 1), ((1, 1), (1, 1)), dimension_numbers=dn,
        feature_group_count=n_half, precision=hp)
    sur = jax.lax.conv_general_dilated(
        y, params["wsur"], (1, 1), ((d, d), (d, d)), rhs_dilation=(d, d),
        dimension_numbers=dn, feature_group_count=n_half, precision=hp)
    joi = jnp.concatenate([loc, sur], axis=1)
    joi = prelu(bn(joi, params["bn2_gamma"], params["bn2_beta"],
                   params["bn2_mean"], params["bn2_var"]), params["prelu2"])
    pooled = jnp.mean(joi, axis=(2, 3))                              # (B, nOut)
    h = jax.nn.relu(jnp.dot(pooled, params["wfc1"].T, precision=hp)
                    + params["bfc1"])
    gate = jax.nn.sigmoid(jnp.dot(h, params["wfc2"].T, precision=hp)
                          + params["bfc2"])
    out = joi * gate[:, :, None, None]
    if add:
        out = x + out
    return out


if __name__ == "__main__":
    # Hyperparameters consistent with ContextGuidedBlock(nIn=32, nOut=32,
    # dilation_rate=2, reduction=16, add=True).  (reduction=16 needs nOut>=16;
    # add=True needs nIn == nOut.)
    nIn = nOut = 32
    n_half = nOut // 2
    reduction = 16
    hidden = nOut // reduction
    dilation_rate = 2
    batch, H, W = 2, 16, 16

    key = jax.random.PRNGKey(0)
    keys = jax.random.split(key, 16)
    u = lambda k, shape, b: jax.random.uniform(k, shape, jnp.float32, -b, b)

    params = {
        "w1":        u(keys[0], (n_half, nIn, 1, 1), 1.0 / (nIn ** 0.5)),
        "bn1_gamma": 1.0 + 0.1 * jax.random.normal(keys[1], (n_half,)),
        "bn1_beta":  0.1 * jax.random.normal(keys[2], (n_half,)),
        "bn1_mean":  0.1 * jax.random.normal(keys[3], (n_half,)),
        "bn1_var":   1.0 + 0.1 * jax.random.uniform(keys[4], (n_half,)),
        "prelu1":    jnp.full((n_half,), 0.25, jnp.float32),
        "wloc":      u(keys[5], (n_half, 1, 3, 3), 1.0 / 3.0),
        "wsur":      u(keys[6], (n_half, 1, 3, 3), 1.0 / 3.0),
        "bn2_gamma": 1.0 + 0.1 * jax.random.normal(keys[7], (nOut,)),
        "bn2_beta":  0.1 * jax.random.normal(keys[8], (nOut,)),
        "bn2_mean":  0.1 * jax.random.normal(keys[9], (nOut,)),
        "bn2_var":   1.0 + 0.1 * jax.random.uniform(keys[10], (nOut,)),
        "prelu2":    jnp.full((nOut,), 0.25, jnp.float32),
        "wfc1":      u(keys[11], (hidden, nOut), 1.0 / (nOut ** 0.5)),
        "bfc1":      u(keys[12], (hidden,), 1.0 / (nOut ** 0.5)),
        "wfc2":      u(keys[13], (nOut, hidden), 1.0 / (hidden ** 0.5)),
        "bfc2":      u(keys[14], (nOut,), 1.0 / (hidden ** 0.5)),
    }
    x = jax.random.normal(keys[15], (batch, nIn, H, W), jnp.float32)

    out = context_guided_block(x, params, dilation_rate=dilation_rate, add=True)
    out = jax.block_until_ready(out)

    ref = _reference_forward(x, params, dilation_rate=dilation_rate, add=True)
    assert out.shape == ref.shape, (out.shape, ref.shape)
    err = float(jnp.max(jnp.abs(out - ref)))
    # 2e-2 tolerance: the two MXU contractions use bf16 operands with f32
    # accumulation (per the perf review); everything else is f32.
    assert err < 2e-2, f"max |err| = {err}"

    print("KERNEL_OK")
</pallas_src>

<mosaic_0001>
module attributes {stable_mosaic.version = 11 : i64} {
  func.func @_cg_block_kernel(%arg0: i32, %arg1: memref<2x32x256xf32, #tpu.memory_space<vmem>>, %arg2: memref<16x32xf32, #tpu.memory_space<vmem>>, %arg3: memref<16x24xf32, #tpu.memory_space<vmem>>, %arg4: memref<8x33xf32, #tpu.memory_space<vmem>>, %arg5: memref<32x3xf32, #tpu.memory_space<vmem>>, %arg6: memref<2x32x256xf32, #tpu.memory_space<vmem>>) attributes {dimension_semantics = [#tpu.dimension_semantics<arbitrary>], iteration_bounds = array<i64: 1>, scalar_prefetch = 0 : i64, scratch_operands = 0 : i64, tpu.core_type = #tpu.core_type<tc>, window_params = [{pipeline_mode = #tpu.pipeline_mode<synchronous>, transform_indices = @transform_0, window_bounds = array<i64: 2, 32, 256>}, {pipeline_mode = #tpu.pipeline_mode<synchronous>, transform_indices = @transform_1, window_bounds = array<i64: 16, 32>}, {pipeline_mode = #tpu.pipeline_mode<synchronous>, transform_indices = @transform_2, window_bounds = array<i64: 16, 24>}, {pipeline_mode = #tpu.pipeline_mode<synchronous>, transform_indices = @transform_3, window_bounds = array<i64: 8, 33>}, {pipeline_mode = #tpu.pipeline_mode<synchronous>, transform_indices = @transform_4, window_bounds = array<i64: 32, 3>}, {pipeline_mode = #tpu.pipeline_mode<synchronous>, transform_indices = @transform_5, window_bounds = array<i64: 2, 32, 256>}]} {
    %c0 = arith.constant 0 : index
    %c0_0 = arith.constant 0 : index
    %0 = vector.load %arg3[%c0, %c0_0] : memref<16x24xf32, #tpu.memory_space<vmem>>, vector<16x24xf32>
    %1 = vector.extract_strided_slice %0 {offsets = [0, 0], sizes = [16, 9], strides = [1, 1]} : vector<16x24xf32> to vector<16x9xf32>
    %2 = vector.extract_strided_slice %0 {offsets = [0, 9], sizes = [16, 9], strides = [1, 1]} : vector<16x24xf32> to vector<16x9xf32>
    %3 = vector.extract_strided_slice %0 {offsets = [0, 18], sizes = [16, 1], strides = [1, 1]} : vector<16x24xf32> to vector<16x1xf32>
    %4 = vector.extract_strided_slice %0 {offsets = [0, 19], sizes = [16, 1], strides = [1, 1]} : vector<16x24xf32> to vector<16x1xf32>
    %5 = vector.extract_strided_slice %0 {offsets = [0, 20], sizes = [16, 1], strides = [1, 1]} : vector<16x24xf32> to vector<16x1xf32>
    %6 = vector.extract_strided_slice %0 {offsets = [0, 21], sizes = [16, 1], strides = [1, 1]} : vector<16x24xf32> to vector<16x1xf32>
    %7 = vector.extract_strided_slice %0 {offsets = [0, 22], sizes = [16, 1], strides = [1, 1]} : vector<16x24xf32> to vector<16x1xf32>
    %8 = vector.extract_strided_slice %0 {offsets = [0, 23], sizes = [16, 1], strides = [1, 1]} : vector<16x24xf32> to vector<16x1xf32>
    %c0_1 = arith.constant 0 : index
    %c0_2 = arith.constant 0 : index
    %9 = vector.load %arg2[%c0_1, %c0_2] : memref<16x32xf32, #tpu.memory_space<vmem>>, vector<16x32xf32>
    %10 = arith.truncf %9 : vector<16x32xf32> to vector<16x32xbf16>
    %c0_3 = arith.constant 0 : index
    %c0_4 = arith.constant 0 : index
    %c0_5 = arith.constant 0 : index
    %11 = vector.load %arg1[%c0_3, %c0_4, %c0_5] : memref<2x32x256xf32, #tpu.memory_space<vmem>>, vector<1x32x256xf32>
    %12 = vector.shape_cast %11 : vector<1x32x256xf32> to vector<32x256xf32>
    %13 = arith.truncf %12 : vector<32x256xf32> to vector<32x256xbf16>
    %cst = arith.constant dense<0.000000e+00> : vector<16x256xf32>
    %14 = tpu.matmul %10, %13, %cst {dimension_numbers = #tpu.dot_dimension_numbers<[1], [0], [0], [1], [0, 0, 1, 1], [], []>} : vector<16x32xbf16>, vector<32x256xbf16>, vector<16x256xf32> -> vector<16x256xf32>
    %c1 = arith.constant 1 : index
    %c0_6 = arith.constant 0 : index
    %c0_7 = arith.constant 0 : index
    %15 = vector.load %arg1[%c1, %c0_6, %c0_7] : memref<2x32x256xf32, #tpu.memory_space<vmem>>, vector<1x32x256xf32>
    %16 = vector.shape_cast %15 : vector<1x32x256xf32> to vector<32x256xf32>
    %17 = arith.truncf %16 : vector<32x256xf32> to vector<32x256xbf16>
    %cst_8 = arith.constant dense<0.000000e+00> : vector<16x256xf32>
    %18 = tpu.matmul %10, %17, %cst_8 {dimension_numbers = #tpu.dot_dimension_numbers<[1], [0], [0], [1], [0, 0, 1, 1], [], []>} : vector<16x32xbf16>, vector<32x256xbf16>, vector<16x256xf32> -> vector<16x256xf32>
    %19 = tpu.concatenate %14, %18 in 0 : vector<16x256xf32>, vector<16x256xf32> -> vector<32x256xf32>
    %20 = tpu.concatenate %3, %3 in 0 : vector<16x1xf32>, vector<16x1xf32> -> vector<32x1xf32>
    %21 = vector.broadcast %20 : vector<32x1xf32> to vector<32x256xf32>
    %22 = arith.addf %19, %21 : vector<32x256xf32>
    %cst_9 = arith.constant 0.000000e+00 : f32
    %23 = vector.broadcast %cst_9 : f32 to vector<32x256xf32>
    %24 = arith.cmpf oge, %22, %23 : vector<32x256xf32>
    %25 = tpu.concatenate %4, %4 in 0 : vector<16x1xf32>, vector<16x1xf32> -> vector<32x1xf32>
    %26 = vector.broadcast %25 : vector<32x1xf32> to vector<32x256xf32>
    %27 = arith.mulf %26, %22 : vector<32x256xf32>
    %28 = arith.select %24, %22, %27 : vector<32x256xi1>, vector<32x256xf32>
    %cst_10 = arith.constant 0.000000e+00 : f32
    %29 = vector.broadcast %cst_10 : f32 to vector<32x34xf32>
    %30 = tpu.concatenate %29, %28, %29 in 1 : vector<32x34xf32>, vector<32x256xf32>, vector<32x34xf32> -> vector<32x324xf32>
    %31 = tpu.iota {dimensions = array<i32: 1>} : vector<1x256xi32>
    %c16_i32 = arith.constant 16 : i32
    %c0_i32 = arith.constant 0 : i32
    %32 = arith.cmpi eq, %c16_i32, %c0_i32 : i32
    %c1_i32 = arith.constant 1 : i32
    %33 = arith.select %32, %c1_i32, %c16_i32 : i32
    %34 = vector.broadcast %33 : i32 to vector<1x256xi32>
    %35 = arith.remsi %31, %34 : vector<1x256xi32>
    %c0_i32_11 = arith.constant 0 : i32
    %36 = vector.broadcast %c0_i32_11 : i32 to vector<1x256xi32>
    %37 = arith.cmpi ne, %35, %36 : vector<1x256xi32>
    %c0_i32_12 = arith.constant 0 : i32
    %38 = vector.broadcast %c0_i32_12 : i32 to vector<1x256xi32>
    %39 = arith.cmpi slt, %35, %38 : vector<1x256xi32>
    %c0_i32_13 = arith.constant 0 : i32
    %40 = arith.cmpi slt, %33, %c0_i32_13 : i32
    %41 = vector.broadcast %40 : i1 to vector<1x256xi1>
    %42 = vector.broadcast %41 : vector<1x256xi1> to vector<1x256xi1>
    %43 = arith.xori %39, %42 : vector<1x256xi1>
    %44 = arith.andi %43, %37 : vector<1x256xi1>
    %45 = vector.broadcast %33 : i32 to vector<1x256xi32>
    %46 = arith.addi %35, %45 : vector<1x256xi32>
    %47 = arith.select %44, %46, %35 : vector<1x256xi1>, vector<1x256xi32>
    %48 = tpu.concatenate %1, %1 in 0 : vector<16x9xf32>, vector<16x9xf32> -> vector<32x9xf32>
    %cst_14 = arith.constant 0.000000e+00 : f32
    %49 = vector.broadcast %cst_14 : f32 to vector<32x256xf32>
    %cst_15 = arith.constant 0.000000e+00 : f32
    %50 = vector.broadcast %cst_15 : f32 to vector<32x256xf32>
    %51 = vector.extract_strided_slice %48 {offsets = [0, 0], sizes = [32, 1], strides = [1, 1]} : vector<32x9xf32> to vector<32x1xf32>
    %52 = vector.extract_strided_slice %30 {offsets = [0, 17], sizes = [32, 256], strides = [1, 1]} : vector<32x324xf32> to vector<32x256xf32>
    %53 = vector.broadcast %51 : vector<32x1xf32> to vector<32x256xf32>
    %54 = arith.mulf %52, %53 : vector<32x256xf32>
    %55 = arith.addf %50, %54 : vector<32x256xf32>
    %56 = vector.extract_strided_slice %48 {offsets = [0, 3], sizes = [32, 1], strides = [1, 1]} : vector<32x9xf32> to vector<32x1xf32>
    %57 = vector.extract_strided_slice %30 {offsets = [0, 33], sizes = [32, 256], strides = [1, 1]} : vector<32x324xf32> to vector<32x256xf32>
    %58 = vector.broadcast %56 : vector<32x1xf32> to vector<32x256xf32>
    %59 = arith.mulf %57, %58 : vector<32x256xf32>
    %60 = arith.addf %55, %59 : vector<32x256xf32>
    %61 = vector.extract_strided_slice %48 {offsets = [0, 6], sizes = [32, 1], strides = [1, 1]} : vector<32x9xf32> to vector<32x1xf32>
    %62 = vector.extract_strided_slice %30 {offsets = [0, 49], sizes = [32, 256], strides = [1, 1]} : vector<32x324xf32> to vector<32x256xf32>
    %63 = vector.broadcast %61 : vector<32x1xf32> to vector<32x256xf32>
    %64 = arith.mulf %62, %63 : vector<32x256xf32>
    %65 = arith.addf %60, %64 : vector<32x256xf32>
    %c1_i32_16 = arith.constant 1 : i32
    %66 = vector.broadcast %c1_i32_16 : i32 to vector<1x256xi32>
    %67 = arith.cmpi sge, %47, %66 : vector<1x256xi32>
    %cst_17 = arith.constant 0.000000e+00 : f32
    %68 = vector.shape_cast %67 : vector<1x256xi1> to vector<1x256xi1>
    %69 = vector.broadcast %68 : vector<1x256xi1> to vector<32x256xi1>
    %70 = vector.broadcast %cst_17 : f32 to vector<32x256xf32>
    %71 = arith.select %69, %65, %70 : vector<32x256xi1>, vector<32x256xf32>
    %72 = arith.addf %49, %71 : vector<32x256xf32>
    %cst_18 = arith.constant 0.000000e+00 : f32
    %73 = vector.broadcast %cst_18 : f32 to vector<32x256xf32>
    %74 = vector.extract_strided_slice %48 {offsets = [0, 1], sizes = [32, 1], strides = [1, 1]} : vector<32x9xf32> to vector<32x1xf32>
    %75 = vector.extract_strided_slice %30 {offsets = [0, 18], sizes = [32, 256], strides = [1, 1]} : vector<32x324xf32> to vector<32x256xf32>
    %76 = vector.broadcast %74 : vector<32x1xf32> to vector<32x256xf32>
    %77 = arith.mulf %75, %76 : vector<32x256xf32>
    %78 = arith.addf %73, %77 : vector<32x256xf32>
    %79 = vector.extract_strided_slice %48 {offsets = [0, 4], sizes = [32, 1], strides = [1, 1]} : vector<32x9xf32> to vector<32x1xf32>
    %80 = vector.extract_strided_slice %30 {offsets = [0, 34], sizes = [32, 256], strides = [1, 1]} : vector<32x324xf32> to vector<32x256xf32>
    %81 = vector.broadcast %79 : vector<32x1xf32> to vector<32x256xf32>
    %82 = arith.mulf %80, %81 : vector<32x256xf32>
    %83 = arith.addf %78, %82 : vector<32x256xf32>
    %84 = vector.extract_strided_slice %48 {offsets = [0, 7], sizes = [32, 1], strides = [1, 1]} : vector<32x9xf32> to vector<32x1xf32>
    %85 = vector.extract_strided_slice %30 {offsets = [0, 50], sizes = [32, 256], strides = [1, 1]} : vector<32x324xf32> to vector<32x256xf32>
    %86 = vector.broadcast %84 : vector<32x1xf32> to vector<32x256xf32>
    %87 = arith.mulf %85, %86 : vector<32x256xf32>
    %88 = arith.addf %83, %87 : vector<32x256xf32>
    %89 = arith.addf %72, %88 : vector<32x256xf32>
    %cst_19 = arith.constant 0.000000e+00 : f32
    %90 = vector.broadcast %cst_19 : f32 to vector<32x256xf32>
    %91 = vector.extract_strided_slice %48 {offsets = [0, 2], sizes = [32, 1], strides = [1, 1]} : vector<32x9xf32> to vector<32x1xf32>
    %92 = vector.extract_strided_slice %30 {offsets = [0, 19], sizes = [32, 256], strides = [1, 1]} : vector<32x324xf32> to vector<32x256xf32>
    %93 = vector.broadcast %91 : vector<32x1xf32> to vector<32x256xf32>
    %94 = arith.mulf %92, %93 : vector<32x256xf32>
    %95 = arith.addf %90, %94 : vector<32x256xf32>
    %96 = vector.extract_strided_slice %48 {offsets = [0, 5], sizes = [32, 1], strides = [1, 1]} : vector<32x9xf32> to vector<32x1xf32>
    %97 = vector.extract_strided_slice %30 {offsets = [0, 35], sizes = [32, 256], strides = [1, 1]} : vector<32x324xf32> to vector<32x256xf32>
    %98 = vector.broadcast %96 : vector<32x1xf32> to vector<32x256xf32>
    %99 = arith.mulf %97, %98 : vector<32x256xf32>
    %100 = arith.addf %95, %99 : vector<32x256xf32>
    %101 = vector.extract_strided_slice %48 {offsets = [0, 8], sizes = [32, 1], strides = [1, 1]} : vector<32x9xf32> to vector<32x1xf32>
    %102 = vector.extract_strided_slice %30 {offsets = [0, 51], sizes = [32, 256], strides = [1, 1]} : vector<32x324xf32> to vector<32x256xf32>
    %103 = vector.broadcast %101 : vector<32x1xf32> to vector<32x256xf32>
    %104 = arith.mulf %102, %103 : vector<32x256xf32>
    %105 = arith.addf %100, %104 : vector<32x256xf32>
    %c15_i32 = arith.constant 15 : i32
    %106 = vector.broadcast %c15_i32 : i32 to vector<1x256xi32>
    %107 = arith.cmpi slt, %47, %106 : vector<1x256xi32>
    %cst_20 = arith.constant 0.000000e+00 : f32
    %108 = vector.shape_cast %107 : vector<1x256xi1> to vector<1x256xi1>
    %109 = vector.broadcast %108 : vector<1x256xi1> to vector<32x256xi1>
    %110 = vector.broadcast %cst_20 : f32 to vector<32x256xf32>
    %111 = arith.select %109, %105, %110 : vector<32x256xi1>, vector<32x256xf32>
    %112 = arith.addf %89, %111 : vector<32x256xf32>
    %113 = tpu.concatenate %2, %2 in 0 : vector<16x9xf32>, vector<16x9xf32> -> vector<32x9xf32>
    %cst_21 = arith.constant 0.000000e+00 : f32
    %114 = vector.broadcast %cst_21 : f32 to vector<32x256xf32>
    %cst_22 = arith.constant 0.000000e+00 : f32
    %115 = vector.broadcast %cst_22 : f32 to vector<32x256xf32>
    %116 = vector.extract_strided_slice %113 {offsets = [0, 0], sizes = [32, 1], strides = [1, 1]} : vector<32x9xf32> to vector<32x1xf32>
    %117 = vector.extract_strided_slice %30 {offsets = [0, 0], sizes = [32, 256], strides = [1, 1]} : vector<32x324xf32> to vector<32x256xf32>
    %118 = vector.broadcast %116 : vector<32x1xf32> to vector<32x256xf32>
    %119 = arith.mulf %117, %118 : vector<32x256xf32>
    %120 = arith.addf %115, %119 : vector<32x256xf32>
    %121 = vector.extract_strided_slice %113 {offsets = [0, 3], sizes = [32, 1], strides = [1, 1]} : vector<32x9xf32> to vector<32x1xf32>
    %122 = vector.extract_strided_slice %30 {offsets = [0, 32], sizes = [32, 256], strides = [1, 1]} : vector<32x324xf32> to vector<32x256xf32>
    %123 = vector.broadcast %121 : vector<32x1xf32> to vector<32x256xf32>
    %124 = arith.mulf %122, %123 : vector<32x256xf32>
    %125 = arith.addf %120, %124 : vector<32x256xf32>
    %126 = vector.extract_strided_slice %113 {offsets = [0, 6], sizes = [32, 1], strides = [1, 1]} : vector<32x9xf32> to vector<32x1xf32>
    %127 = vector.extract_strided_slice %30 {offsets = [0, 64], sizes = [32, 256], strides = [1, 1]} : vector<32x324xf32> to vector<32x256xf32>
    %128 = vector.broadcast %126 : vector<32x1xf32> to vector<32x256xf32>
    %129 = arith.mulf %127, %128 : vector<32x256xf32>
    %130 = arith.addf %125, %129 : vector<32x256xf32>
    %c2_i32 = arith.constant 2 : i32
    %131 = vector.broadcast %c2_i32 : i32 to vector<1x256xi32>
    %132 = arith.cmpi sge, %47, %131 : vector<1x256xi32>
    %cst_23 = arith.constant 0.000000e+00 : f32
    %133 = vector.shape_cast %132 : vector<1x256xi1> to vector<1x256xi1>
    %134 = vector.broadcast %133 : vector<1x256xi1> to vector<32x256xi1>
    %135 = vector.broadcast %cst_23 : f32 to vector<32x256xf32>
    %136 = arith.select %134, %130, %135 : vector<32x256xi1>, vector<32x256xf32>
    %137 = arith.addf %114, %136 : vector<32x256xf32>
    %cst_24 = arith.constant 0.000000e+00 : f32
    %138 = vector.broadcast %cst_24 : f32 to vector<32x256xf32>
    %139 = vector.extract_strided_slice %113 {offsets = [0, 1], sizes = [32, 1], strides = [1, 1]} : vector<32x9xf32> to vector<32x1xf32>
    %140 = vector.extract_strided_slice %30 {offsets = [0, 2], sizes = [32, 256], strides = [1, 1]} : vector<32x324xf32> to vector<32x256xf32>
    %141 = vector.broadcast %139 : vector<32x1xf32> to vector<32x256xf32>
    %142 = arith.mulf %140, %141 : vector<32x256xf32>
    %143 = arith.addf %138, %142 : vector<32x256xf32>
    %144 = vector.extract_strided_slice %113 {offsets = [0, 4], sizes = [32, 1], strides = [1, 1]} : vector<32x9xf32> to vector<32x1xf32>
    %145 = vector.extract_strided_slice %30 {offsets = [0, 34], sizes = [32, 256], strides = [1, 1]} : vector<32x324xf32> to vector<32x256xf32>
    %146 = vector.broadcast %144 : vector<32x1xf32> to vector<32x256xf32>
    %147 = arith.mulf %145, %146 : vector<32x256xf32>
    %148 = arith.addf %143, %147 : vector<32x256xf32>
    %149 = vector.extract_strided_slice %113 {offsets = [0, 7], sizes = [32, 1], strides = [1, 1]} : vector<32x9xf32> to vector<32x1xf32>
    %150 = vector.extract_strided_slice %30 {offsets = [0, 66], sizes = [32, 256], strides = [1, 1]} : vector<32x324xf32> to vector<32x256xf32>
    %151 = vector.broadcast %149 : vector<32x1xf32> to vector<32x256xf32>
    %152 = arith.mulf %150, %151 : vector<32x256xf32>
    %153 = arith.addf %148, %152 : vector<32x256xf32>
    %154 = arith.addf %137, %153 : vector<32x256xf32>
    %cst_25 = arith.constant 0.000000e+00 : f32
    %155 = vector.broadcast %cst_25 : f32 to vector<32x256xf32>
    %156 = vector.extract_strided_slice %113 {offsets = [0, 2], sizes = [32, 1], strides = [1, 1]} : vector<32x9xf32> to vector<32x1xf32>
    %157 = vector.extract_strided_slice %30 {offsets = [0, 4], sizes = [32, 256], strides = [1, 1]} : vector<32x324xf32> to vector<32x256xf32>
    %158 = vector.broadcast %156 : vector<32x1xf32> to vector<32x256xf32>
    %159 = arith.mulf %157, %158 : vector<32x256xf32>
    %160 = arith.addf %155, %159 : vector<32x256xf32>
    %161 = vector.extract_strided_slice %113 {offsets = [0, 5], sizes = [32, 1], strides = [1, 1]} : vector<32x9xf32> to vector<32x1xf32>
    %162 = vector.extract_strided_slice %30 {offsets = [0, 36], sizes = [32, 256], strides = [1, 1]} : vector<32x324xf32> to vector<32x256xf32>
    %163 = vector.broadcast %161 : vector<32x1xf32> to vector<32x256xf32>
    %164 = arith.mulf %162, %163 : vector<32x256xf32>
    %165 = arith.addf %160, %164 : vector<32x256xf32>
    %166 = vector.extract_strided_slice %113 {offsets = [0, 8], sizes = [32, 1], strides = [1, 1]} : vector<32x9xf32> to vector<32x1xf32>
    %167 = vector.extract_strided_slice %30 {offsets = [0, 68], sizes = [32, 256], strides = [1, 1]} : vector<32x324xf32> to vector<32x256xf32>
    %168 = vector.broadcast %166 : vector<32x1xf32> to vector<32x256xf32>
    %169 = arith.mulf %167, %168 : vector<32x256xf32>
    %170 = arith.addf %165, %169 : vector<32x256xf32>
    %c14_i32 = arith.constant 14 : i32
    %171 = vector.broadcast %c14_i32 : i32 to vector<1x256xi32>
    %172 = arith.cmpi slt, %47, %171 : vector<1x256xi32>
    %cst_26 = arith.constant 0.000000e+00 : f32
    %173 = vector.shape_cast %172 : vector<1x256xi1> to vector<1x256xi1>
    %174 = vector.broadcast %173 : vector<1x256xi1> to vector<32x256xi1>
    %175 = vector.broadcast %cst_26 : f32 to vector<32x256xf32>
    %176 = arith.select %174, %170, %175 : vector<32x256xi1>, vector<32x256xf32>
    %177 = arith.addf %154, %176 : vector<32x256xf32>
    %178 = tpu.concatenate %5, %5 in 0 : vector<16x1xf32>, vector<16x1xf32> -> vector<32x1xf32>
    %179 = vector.broadcast %178 : vector<32x1xf32> to vector<32x256xf32>
    %180 = arith.addf %112, %179 : vector<32x256xf32>
    %cst_27 = arith.constant 0.000000e+00 : f32
    %181 = vector.broadcast %cst_27 : f32 to vector<32x256xf32>
    %182 = arith.cmpf oge, %180, %181 : vector<32x256xf32>
    %183 = tpu.concatenate %6, %6 in 0 : vector<16x1xf32>, vector<16x1xf32> -> vector<32x1xf32>
    %184 = vector.broadcast %183 : vector<32x1xf32> to vector<32x256xf32>
    %185 = arith.mulf %184, %180 : vector<32x256xf32>
    %186 = arith.select %182, %180, %185 : vector<32x256xi1>, vector<32x256xf32>
    %187 = tpu.concatenate %7, %7 in 0 : vector<16x1xf32>, vector<16x1xf32> -> vector<32x1xf32>
    %188 = vector.broadcast %187 : vector<32x1xf32> to vector<32x256xf32>
    %189 = arith.addf %177, %188 : vector<32x256xf32>
    %cst_28 = arith.constant 0.000000e+00 : f32
    %190 = vector.broadcast %cst_28 : f32 to vector<32x256xf32>
    %191 = arith.cmpf oge, %189, %190 : vector<32x256xf32>
    %192 = tpu.concatenate %8, %8 in 0 : vector<16x1xf32>, vector<16x1xf32> -> vector<32x1xf32>
    %193 = vector.broadcast %192 : vector<32x1xf32> to vector<32x256xf32>
    %194 = arith.mulf %193, %189 : vector<32x256xf32>
    %195 = arith.select %191, %189, %194 : vector<32x256xi1>, vector<32x256xf32>
    %c0_29 = arith.constant 0 : index
    %c0_30 = arith.constant 0 : index
    %196 = vector.load %arg4[%c0_29, %c0_30] : memref<8x33xf32, #tpu.memory_space<vmem>>, vector<8x33xf32>
    %197 = vector.extract_strided_slice %196 {offsets = [0, 0], sizes = [8, 32], strides = [1, 1]} : vector<8x33xf32> to vector<8x32xf32>
    %198 = arith.truncf %197 : vector<8x32xf32> to vector<8x32xbf16>
    %199 = vector.extract_strided_slice %196 {offsets = [0, 32], sizes = [8, 1], strides = [1, 1]} : vector<8x33xf32> to vector<8x1xf32>
    %c0_31 = arith.constant 0 : index
    %c0_32 = arith.constant 0 : index
    %200 = vector.load %arg5[%c0_31, %c0_32] : memref<32x3xf32, #tpu.memory_space<vmem>>, vector<32x3xf32>
    %201 = vector.extract_strided_slice %200 {offsets = [0, 0], sizes = [32, 2], strides = [1, 1]} : vector<32x3xf32> to vector<32x2xf32>
    %202 = vector.extract_strided_slice %200 {offsets = [0, 2], sizes = [32, 1], strides = [1, 1]} : vector<32x3xf32> to vector<32x1xf32>
    %203 = vector.extract_strided_slice %186 {offsets = [0, 0], sizes = [16, 256], strides = [1, 1]} : vector<32x256xf32> to vector<16x256xf32>
    %204 = vector.extract_strided_slice %195 {offsets = [0, 0], sizes = [16, 256], strides = [1, 1]} : vector<32x256xf32> to vector<16x256xf32>
    %205 = tpu.concatenate %203, %204 in 0 : vector<16x256xf32>, vector<16x256xf32> -> vector<32x256xf32>
    %206 = arith.truncf %205 : vector<32x256xf32> to vector<32x256xbf16>
    %cst_33 = arith.constant dense<0.000000e+00> : vector<8x256xf32>
    %207 = tpu.matmul %198, %206, %cst_33 {dimension_numbers = #tpu.dot_dimension_numbers<[1], [0], [0], [1], [0, 0, 1, 1], [], []>} : vector<8x32xbf16>, vector<32x256xbf16>, vector<8x256xf32> -> vector<8x256xf32>
    %cst_34 = arith.constant dense<0.000000e+00> : vector<8xf32>
    %208 = vector.multi_reduction <add>, %207, %cst_34 [1] : vector<8x256xf32> to vector<8xf32>
    %209 = vector.shape_cast %208 : vector<8xf32> to vector<8x1xf32>
    %cst_35 = arith.constant 3.906250e-03 : f32
    %210 = vector.broadcast %cst_35 : f32 to vector<8x1xf32>
    %211 = arith.mulf %209, %210 : vector<8x1xf32>
    %212 = arith.addf %211, %199 : vector<8x1xf32>
    %cst_36 = arith.constant 0.000000e+00 : f32
    %213 = vector.broadcast %cst_36 : f32 to vector<8x1xf32>
    %214 = arith.maximumf %212, %213 : vector<8x1xf32>
    %215 = vector.extract_strided_slice %201 {offsets = [0, 0], sizes = [32, 1], strides = [1, 1]} : vector<32x2xf32> to vector<32x1xf32>
    %216 = vector.extract_strided_slice %214 {offsets = [0, 0], sizes = [1, 1], strides = [1, 1]} : vector<8x1xf32> to vector<1x1xf32>
    %217 = vector.broadcast %216 : vector<1x1xf32> to vector<32x1xf32>
    %218 = arith.mulf %215, %217 : vector<32x1xf32>
    %219 = arith.addf %202, %218 : vector<32x1xf32>
    %220 = vector.extract_strided_slice %201 {offsets = [0, 1], sizes = [32, 1], strides = [1, 1]} : vector<32x2xf32> to vector<32x1xf32>
    %221 = vector.extract_strided_slice %214 {offsets = [1, 0], sizes = [1, 1], strides = [1, 1]} : vector<8x1xf32> to vector<1x1xf32>
    %222 = vector.broadcast %221 : vector<1x1xf32> to vector<32x1xf32>
    %223 = arith.mulf %220, %222 : vector<32x1xf32>
    %224 = arith.addf %219, %223 : vector<32x1xf32>
    %cst_37 = arith.constant 5.000000e-01 : f32
    %225 = vector.broadcast %cst_37 : f32 to vector<32x1xf32>
    %226 = arith.mulf %225, %224 : vector<32x1xf32>
    %227 = math.tanh %226 : vector<32x1xf32>
    %cst_38 = arith.constant 1.000000e+00 : f32
    %228 = vector.broadcast %cst_38 : f32 to vector<32x1xf32>
    %229 = arith.addf %227, %228 : vector<32x1xf32>
    %cst_39 = arith.constant 5.000000e-01 : f32
    %230 = vector.broadcast %cst_39 : f32 to vector<32x1xf32>
    %231 = arith.mulf %230, %229 : vector<32x1xf32>
    %232 = vector.broadcast %231 : vector<32x1xf32> to vector<32x256xf32>
    %233 = arith.mulf %205, %232 : vector<32x256xf32>
    %c0_40 = arith.constant 0 : index
    %c0_41 = arith.constant 0 : index
    %c0_42 = arith.constant 0 : index
    %234 = vector.load %arg1[%c0_40, %c0_41, %c0_42] : memref<2x32x256xf32, #tpu.memory_space<vmem>>, vector<1x32x256xf32>
    %235 = vector.shape_cast %234 : vector<1x32x256xf32> to vector<32x256xf32>
    %236 = arith.addf %233, %235 : vector<32x256xf32>
    %c0_43 = arith.constant 0 : index
    %c0_44 = arith.constant 0 : index
    %c0_45 = arith.constant 0 : index
    %237 = vector.load %arg6[%c0_43, %c0_44, %c0_45] : memref<2x32x256xf32, #tpu.memory_space<vmem>>, vector<1x32x256xf32>
    %238 = vector.shape_cast %237 : vector<1x32x256xf32> to vector<32x256xf32>
    %239 = vector.shape_cast %236 : vector<32x256xf32> to vector<1x32x256xf32>
    tpu.vector_store %arg6[%c0_43, %c0_44, %c0_45], %239 {strides = array<i32>} : memref<2x32x256xf32, #tpu.memory_space<vmem>>, vector<1x32x256xf32>,
    %240 = vector.extract_strided_slice %186 {offsets = [16, 0], sizes = [16, 256], strides = [1, 1]} : vector<32x256xf32> to vector<16x256xf32>
    %241 = vector.extract_strided_slice %195 {offsets = [16, 0], sizes = [16, 256], strides = [1, 1]} : vector<32x256xf32> to vector<16x256xf32>
    %242 = tpu.concatenate %240, %241 in 0 : vector<16x256xf32>, vector<16x256xf32> -> vector<32x256xf32>
    %243 = arith.truncf %242 : vector<32x256xf32> to vector<32x256xbf16>
    %cst_46 = arith.constant dense<0.000000e+00> : vector<8x256xf32>
    %244 = tpu.matmul %198, %243, %cst_46 {dimension_numbers = #tpu.dot_dimension_numbers<[1], [0], [0], [1], [0, 0, 1, 1], [], []>} : vector<8x32xbf16>, vector<32x256xbf16>, vector<8x256xf32> -> vector<8x256xf32>
    %cst_47 = arith.constant dense<0.000000e+00> : vector<8xf32>
    %245 = vector.multi_reduction <add>, %244, %cst_47 [1] : vector<8x256xf32> to vector<8xf32>
    %246 = vector.shape_cast %245 : vector<8xf32> to vector<8x1xf32>
    %cst_48 = arith.constant 3.906250e-03 : f32
    %247 = vector.broadcast %cst_48 : f32 to vector<8x1xf32>
    %248 = arith.mulf %246, %247 : vector<8x1xf32>
    %249 = arith.addf %248, %199 : vector<8x1xf32>
    %cst_49 = arith.constant 0.000000e+00 : f32
    %250 = vector.broadcast %cst_49 : f32 to vector<8x1xf32>
    %251 = arith.maximumf %249, %250 : vector<8x1xf32>
    %252 = vector.extract_strided_slice %201 {offsets = [0, 0], sizes = [32, 1], strides = [1, 1]} : vector<32x2xf32> to vector<32x1xf32>
    %253 = vector.extract_strided_slice %251 {offsets = [0, 0], sizes = [1, 1], strides = [1, 1]} : vector<8x1xf32> to vector<1x1xf32>
    %254 = vector.broadcast %253 : vector<1x1xf32> to vector<32x1xf32>
    %255 = arith.mulf %252, %254 : vector<32x1xf32>
    %256 = arith.addf %202, %255 : vector<32x1xf32>
    %257 = vector.extract_strided_slice %201 {offsets = [0, 1], sizes = [32, 1], strides = [1, 1]} : vector<32x2xf32> to vector<32x1xf32>
    %258 = vector.extract_strided_slice %251 {offsets = [1, 0], sizes = [1, 1], strides = [1, 1]} : vector<8x1xf32> to vector<1x1xf32>
    %259 = vector.broadcast %258 : vector<1x1xf32> to vector<32x1xf32>
    %260 = arith.mulf %257, %259 : vector<32x1xf32>
    %261 = arith.addf %256, %260 : vector<32x1xf32>
    %cst_50 = arith.constant 5.000000e-01 : f32
    %262 = vector.broadcast %cst_50 : f32 to vector<32x1xf32>
    %263 = arith.mulf %262, %261 : vector<32x1xf32>
    %264 = math.tanh %263 : vector<32x1xf32>
    %cst_51 = arith.constant 1.000000e+00 : f32
    %265 = vector.broadcast %cst_51 : f32 to vector<32x1xf32>
    %266 = arith.addf %264, %265 : vector<32x1xf32>
    %cst_52 = arith.constant 5.000000e-01 : f32
    %267 = vector.broadcast %cst_52 : f32 to vector<32x1xf32>
    %268 = arith.mulf %267, %266 : vector<32x1xf32>
    %269 = vector.broadcast %268 : vector<32x1xf32> to vector<32x256xf32>
    %270 = arith.mulf %242, %269 : vector<32x256xf32>
    %c1_53 = arith.constant 1 : index
    %c0_54 = arith.constant 0 : index
    %c0_55 = arith.constant 0 : index
    %271 = vector.load %arg1[%c1_53, %c0_54, %c0_55] : memref<2x32x256xf32, #tpu.memory_space<vmem>>, vector<1x32x256xf32>
    %272 = vector.shape_cast %271 : vector<1x32x256xf32> to vector<32x256xf32>
    %273 = arith.addf %270, %272 : vector<32x256xf32>
    %c1_56 = arith.constant 1 : index
    %c0_57 = arith.constant 0 : index
    %c0_58 = arith.constant 0 : index
    %274 = vector.load %arg6[%c1_56, %c0_57, %c0_58] : memref<2x32x256xf32, #tpu.memory_space<vmem>>, vector<1x32x256xf32>
    %275 = vector.shape_cast %274 : vector<1x32x256xf32> to vector<32x256xf32>
    %276 = vector.shape_cast %273 : vector<32x256xf32> to vector<1x32x256xf32>
    tpu.vector_store %arg6[%c1_56, %c0_57, %c0_58], %276 {strides = array<i32>} : memref<2x32x256xf32, #tpu.memory_space<vmem>>, vector<1x32x256xf32>,
    return
  }
  func.func @transform_0(%arg0: i32) -> (i32, i32, i32) {
    %c0_i32 = arith.constant 0 : i32
    %c0_i32_0 = arith.constant 0 : i32
    %c0_i32_1 = arith.constant 0 : i32
    %c0_i32_2 = arith.constant 0 : i32
    return %c0_i32, %c0_i32_0, %c0_i32_1 : i32, i32, i32
  }
  func.func @transform_1(%arg0: i32) -> (i32, i32) {
    %c0_i32 = arith.constant 0 : i32
    %c0_i32_0 = arith.constant 0 : i32
    %c0_i32_1 = arith.constant 0 : i32
    return %c0_i32, %c0_i32_0 : i32, i32
  }
  func.func @transform_2(%arg0: i32) -> (i32, i32) {
    %c0_i32 = arith.constant 0 : i32
    %c0_i32_0 = arith.constant 0 : i32
    %c0_i32_1 = arith.constant 0 : i32
    return %c0_i32, %c0_i32_0 : i32, i32
  }
  func.func @transform_3(%arg0: i32) -> (i32, i32) {
    %c0_i32 = arith.constant 0 : i32
    %c0_i32_0 = arith.constant 0 : i32
    %c0_i32_1 = arith.constant 0 : i32
    return %c0_i32, %c0_i32_0 : i32, i32
  }
  func.func @transform_4(%arg0: i32) -> (i32, i32) {
    %c0_i32 = arith.constant 0 : i32
    %c0_i32_0 = arith.constant 0 : i32
    %c0_i32_1 = arith.constant 0 : i32
    return %c0_i32, %c0_i32_0 : i32, i32
  }
  func.func @transform_5(%arg0: i32) -> (i32, i32, i32) {
    %c0_i32 = arith.constant 0 : i32
    %c0_i32_0 = arith.constant 0 : i32
    %c0_i32_1 = arith.constant 0 : i32
    %c0_i32_2 = arith.constant 0 : i32
    return %c0_i32, %c0_i32_0, %c0_i32_1 : i32, i32, i32
  }
}

</mosaic_0001>

<llo_original>
// kernel: tpu_custom_call.1
$region0: #{tpu_custom_call.1}
  #allocation0 [shape = 'u32[]', space=smem, size = 0x4, offset = 0x4, fixed_abs, tag = 'smem constant byte address 0x4 - core index']
  #allocation1 [shape = 'u32[144,128]{1,0:T(1,128)}', space=vmem, size = 0x12000, scoped, tag = 'internal scratch']
  %s0 = inlined_call_operand.hbm [shape: f32[2,32,256], index: 0, kind: input, shape index: {}]
  %s1 = inlined_call_operand.vmem [shape: f32[16,32], index: 1, kind: input, shape index: {}]
  %s2 = inlined_call_operand.vmem [shape: f32[16,24], index: 2, kind: input, shape index: {}]
  %s3 = inlined_call_operand.vmem [shape: f32[8,33], index: 3, kind: input, shape index: {}]
  %s4 = inlined_call_operand.vmem [shape: f32[32,3], index: 4, kind: input, shape index: {}]
  %s5 = inlined_call_operand.hbm [shape: f32[2,32,256], index: 5, kind: output, shape index: {}]
  %s6 = sld [smem:[#allocation0]]
  $region34: #{tpu_custom_call.1} parent=0
    _
  %s8 = ssub.s32 1, %s6
  %s9 = scalar_select 0, %s8, %s6
  $region1: #{tpu_custom_call.1} parent=0
    #allocation2 [shape = 'u8[65536]{0}', space=vmem, size = 0x10000, scoped, tag = 'input window, operand 0, single buffered']
    #allocation3 [shape = 's32[1]{0}', space=sflag, size = 0x4, scoped, tag = 'scoped memory for tpu_custom_call.1']
    #allocation4 [shape = 's32[1]{0}', space=sflag, size = 0x4, scoped, tag = 'scoped memory for tpu_custom_call.1']
    #allocation5 [shape = 'u8[65536]{0}', space=vmem, size = 0x10000, scoped, tag = 'output window, operand 0, single buffered']
    %10 = vsyncpa [#allocation3], 0
    %11 = vsyncpa [#allocation4], 0
    // Predicated region
    $region2: #{tpu_custom_call.1} parent=1 // pred_check
      _
    $region3: #{tpu_custom_call.1} parent=1 // pred_check_branch
      %13 = sbr.rel (0) target = $region5
    $region4: #{tpu_custom_call.1} parent=1 // pred_region
      %s15 = ssub.s32 2048, 2048
      %16 = vsyncadd [#allocation3], %s15
      %s17 = sshll.u32 [#allocation2], 4
      %s18 = int_to_ptr.vmem [resolvable:$true] %s17
      %23 = dma.hbm_to_vmem [thread:$0]  %s0, 2048, %s18, [#allocation3], 256, 256, 16
    $region5: #{tpu_custom_call.1} parent=1 // pred_fallthru
      _
    // Predicated region
    $region6: #{tpu_custom_call.1} parent=1 // pred_check
      _
    $region7: #{tpu_custom_call.1} parent=1 // pred_check_branch
      %25 = sbr.rel (0) target = $region9
    $region8: #{tpu_custom_call.1} parent=1 // pred_region
      _
    $region9: #{tpu_custom_call.1} parent=1 // pred_fallthru
      _
    // Predicated region
    $region10: #{tpu_custom_call.1} parent=1 // pred_check
      _
    $region11: #{tpu_custom_call.1} parent=1 // pred_check_branch
      %27 = sbr.rel (0) target = $region13
    $region12: #{tpu_custom_call.1} parent=1 // pred_region
      _
    $region13: #{tpu_custom_call.1} parent=1 // pred_fallthru
      _
    // Predicated region
    $region14: #{tpu_custom_call.1} parent=1 // pred_check
      _
    $region15: #{tpu_custom_call.1} parent=1 // pred_check_branch
      %29 = sbr.rel (0) target = $region17
    $region16: #{tpu_custom_call.1} parent=1 // pred_region
      _
    $region17: #{tpu_custom_call.1} parent=1 // pred_fallthru
      _
    // Predicated region
    $region18: #{tpu_custom_call.1} parent=1 // pred_check
      _
    $region19: #{tpu_custom_call.1} parent=1 // pred_check_branch
      %31 = sbr.rel (0) target = $region21
    $region20: #{tpu_custom_call.1} parent=1 // pred_region
      _
    $region21: #{tpu_custom_call.1} parent=1 // pred_fallthru
      _
    // Predicated region
    $region22: #{tpu_custom_call.1} parent=1 // pred_check
      _
    $region23: #{tpu_custom_call.1} parent=1 // pred_check_branch
      %33 = sbr.rel (0) target = $region25
    $region24: #{tpu_custom_call.1} parent=1 // pred_region
      %34 = dma.done [#allocation3], 2048
    $region25: #{tpu_custom_call.1} parent=1 // pred_fallthru
      _
    %v36 = vld [vmem:[%s2] sm:$0xff]
    %v37 = vld [vmem:[%s2 + $0x8] sm:$0xff]
    %v38 = vld [vmem:[%s1] sm:$0xff]
    %v39 = vld [vmem:[%s1 + $0x8] sm:$0xff]
    %v40 = vpack.c.bf16 %v39, %v38
    %v41 = vld [vmem:[#allocation2] sm:$0xff]
    %v42 = vld [vmem:[#allocation2 + $0x8] sm:$0xff]
    %v43 = vld [vmem:[#allocation2 + $0x10] sm:$0xff]
    %v44 = vld [vmem:[#allocation2 + $0x18] sm:$0xff]
    %v45 = vld [vmem:[#allocation2 + $0x20] sm:$0xff]
    %v46 = vld [vmem:[#allocation2 + $0x28] sm:$0xff]
    %v47 = vld [vmem:[#allocation2 + $0x30] sm:$0xff]
    %v48 = vld [vmem:[#allocation2 + $0x38] sm:$0xff]
    %v49 = vpack.c.bf16 %v43, %v41
    %v50 = vpack.c.bf16 %v44, %v42
    %v51 = vpack.c.bf16 %v47, %v45
    %v52 = vpack.c.bf16 %v48, %v46
    %vm53 = vcmask 261120
    %v55 = vsel %vm53, %v40, 0
    %57 = vmatprep.subr.bf16.mxu0 %v50
    %58 = vmatpush1.bf16.msra.mxu0 %v49
    %59 = vmatprep.subr.bf16.mxu0 %v52
    %60 = vmatpush1.bf16.msra.mxu0 %v51
    %61 = vmatprep.subr.bf16.mxu0 0
    %62 = vmatpush1.bf16.msra.mxu0 0
    %63 = vmatprep.subr.bf16.mxu0 0
    %64 = vmatpush1.bf16.msra.mxu0 0
    %65 = vmatprep.subr.bf16.mxu0 0
    %66 = vmatpush1.bf16.msra.mxu0 0
    %67 = vmatprep.subr.bf16.mxu0 0
    %68 = vmatpush1.bf16.msra.mxu0 0
    %69 = vmatprep.subr.bf16.mxu0 0
    %70 = vmatpush1.bf16.msra.mxu0 0
    %71 = vmatprep.subr.bf16.mxu0 0
    %72 = vmatpush1.bf16.msra.mxu0 0
    %73 = vmatprep.subr.bf16.mxu0 0
    %74 = vmatpush1.bf16.msra.mxu0 0
    %75 = vmatprep.subr.bf16.mxu0 0
    %76 = vmatpush1.bf16.msra.mxu0 0
    %77 = vmatprep.subr.bf16.mxu0 0
    %78 = vmatpush1.bf16.msra.mxu0 0
    %79 = vmatprep.subr.bf16.mxu0 0
    %80 = vmatpush1.bf16.msra.mxu0 0
    %81 = vmatprep.subr.bf16.mxu0 0
    %82 = vmatpush1.bf16.msra.mxu0 0
    %83 = vmatprep.subr.bf16.mxu0 0
    %84 = vmatpush1.bf16.msra.mxu0 0
    %85 = vmatprep.subr.bf16.mxu0 0
    %86 = vmatpush1.bf16.msra.mxu0 0
    %87 = vmatprep.subr.bf16.mxu0 0
    %88 = vmatpush1.bf16.msra.mxu0 0
    %89 = vmatprep.mubr.bf16.mxu0 0
    %90 = vmatmul.mubr.bf16.gmra.mrb[0].mxu0 %v55
    %v91 = vpop.f32.mrb[0].mxu0
    %v92 = vadd.f32 0.0, %v91
    %v93 = vpop.f32.mrb[0].mxu0
    %v94 = vadd.f32 0.0, %v93
    %v95 = vpop.f32.mrb[0].mxu0
    %v96 = vadd.f32 0.0, %v95
    %v97 = vpop.f32.mrb[0].mxu0
    %v98 = vadd.f32 0.0, %v97
    %99 = vdwg.mxu0
    %s100 = scalar_lea.vmem [#allocation2], 64
    %v101 = vld [vmem:[%s100] sm:$0xff]
    %v102 = vld [vmem:[%s100 + $0x8] sm:$0xff]
    %v103 = vld [vmem:[%s100 + $0x10] sm:$0xff]
    %v104 = vld [vmem:[%s100 + $0x18] sm:$0xff]
    %v105 = vld [vmem:[%s100 + $0x20] sm:$0xff]
    %v106 = vld [vmem:[%s100 + $0x28] sm:$0xff]
    %v107 = vld [vmem:[%s100 + $0x30] sm:$0xff]
    %v108 = vld [vmem:[%s100 + $0x38] sm:$0xff]
    %v109 = vpack.c.bf16 %v103, %v101
    %v110 = vpack.c.bf16 %v104, %v102
    %v111 = vpack.c.bf16 %v107, %v105
    %v112 = vpack.c.bf16 %v108, %v106
    %113 = vmatprep.subr.bf16.mxu0 %v110
    %114 = vmatpush1.bf16.msra.mxu0 %v109
    %115 = vmatprep.subr.bf16.mxu0 %v112
    %116 = vmatpush1.bf16.msra.mxu0 %v111
    %117 = vmatprep.subr.bf16.mxu0 0
    %118 = vmatpush1.bf16.msra.mxu0 0
    %119 = vmatprep.subr.bf16.mxu0 0
    %120 = vmatpush1.bf16.msra.mxu0 0
    %121 = vmatprep.subr.bf16.mxu0 0
    %122 = vmatpush1.bf16.msra.mxu0 0
    %123 = vmatprep.subr.bf16.mxu0 0
    %124 = vmatpush1.bf16.msra.mxu0 0
    %125 = vmatprep.subr.bf16.mxu0 0
    %126 = vmatpush1.bf16.msra.mxu0 0
    %127 = vmatprep.subr.bf16.mxu0 0
    %128 = vmatpush1.bf16.msra.mxu0 0
    %129 = vmatprep.subr.bf16.mxu0 0
    %130 = vmatpush1.bf16.msra.mxu0 0
    %131 = vmatprep.subr.bf16.mxu0 0
    %132 = vmatpush1.bf16.msra.mxu0 0
    %133 = vmatprep.subr.bf16.mxu0 0
    %134 = vmatpush1.bf16.msra.mxu0 0
    %135 = vmatprep.subr.bf16.mxu0 0
    %136 = vmatpush1.bf16.msra.mxu0 0
    %137 = vmatprep.subr.bf16.mxu0 0
    %138 = vmatpush1.bf16.msra.mxu0 0
    %139 = vmatprep.subr.bf16.mxu0 0
    %140 = vmatpush1.bf16.msra.mxu0 0
    %141 = vmatprep.subr.bf16.mxu0 0
    %142 = vmatpush1.bf16.msra.mxu0 0
    %143 = vmatprep.subr.bf16.mxu0 0
    %144 = vmatpush1.bf16.msra.mxu0 0
    %145 = vmatprep.mubr.bf16.mxu0 0
    %146 = vmatmul.mubr.bf16.gmra.mrb[0].mxu0 %v55
    %v147 = vpop.f32.mrb[0].mxu0
    %v148 = vadd.f32 0.0, %v147
    %v149 = vpop.f32.mrb[0].mxu0
    %v150 = vadd.f32 0.0, %v149
    %v151 = vpop.f32.mrb[0].mxu0
    %v152 = vadd.f32 0.0, %v151
    %v153 = vpop.f32.mrb[0].mxu0
    %v154 = vadd.f32 0.0, %v153
    %155 = vdwg.mxu0
    %157 = vset.pattern.permute.xlu0 18
    %158 = vperm.xlu0 %157, %v36
    %v159 = vpop.permute.xlu0 %158
    %162 = vset.pattern.permute.xlu0 18
    %163 = vperm.xlu0 %162, %v37
    %v164 = vpop.permute.xlu0 %163
    %v166 = vadd.f32 %v92, %v159
    %v167 = vadd.f32 %v94, %v159
    %v168 = vadd.f32 %v96, %v164
    %v169 = vadd.f32 %v98, %v164
    %v170 = vadd.f32 %v148, %v159
    %v171 = vadd.f32 %v150, %v159
    %v172 = vadd.f32 %v152, %v164
    %v173 = vadd.f32 %v154, %v164
    %vm174 = vcmp.ge.f32.partialorder %v166, 0.0
    %vm175 = vcmp.ge.f32.partialorder %v167, 0.0
    %vm176 = vcmp.ge.f32.partialorder %v168, 0.0
    %vm177 = vcmp.ge.f32.partialorder %v169, 0.0
    %vm178 = vcmp.ge.f32.partialorder %v170, 0.0
    %vm179 = vcmp.ge.f32.partialorder %v171, 0.0
    %vm180 = vcmp.ge.f32.partialorder %v172, 0.0
    %vm181 = vcmp.ge.f32.partialorder %v173, 0.0
    %182 = vset.pattern.permute.xlu0 19
    %183 = vperm.xlu0 %182, %v36
    %v184 = vpop.permute.xlu0 %183
    %186 = vset.pattern.permute.xlu0 19
    %187 = vperm.xlu0 %186, %v37
    %v188 = vpop.permute.xlu0 %187
    %v190 = vmul.f32 %v184, %v166
    %v191 = vmul.f32 %v184, %v167
    %v192 = vmul.f32 %v188, %v168
    %v193 = vmul.f32 %v188, %v169
    %v194 = vmul.f32 %v184, %v170
    %v195 = vmul.f32 %v184, %v171
    %v196 = vmul.f32 %v188, %v172
    %v197 = vmul.f32 %v188, %v173
    %v198 = vsel %vm174, %v166, %v190
    %v199 = vsel %vm175, %v167, %v191
    %v200 = vsel %vm176, %v168, %v192
    %v201 = vsel %vm177, %v169, %v193
    %v202 = vsel %vm178, %v170, %v194
    %v203 = vsel %vm179, %v171, %v195
    %v204 = vsel %vm180, %v172, %v196
    %v205 = vsel %vm181, %v173, %v197
    %214 = vrot.lane.b32.xlu0 %v198, 34
    %v215 = vpop.permute.xlu0 %214
    %216 = vrot.lane.b32.xlu0 %v199, 34
    %v217 = vpop.permute.xlu0 %216
    %218 = vrot.lane.b32.xlu0 %v200, 34
    %v219 = vpop.permute.xlu0 %218
    %220 = vrot.lane.b32.xlu0 %v201, 34
    %v221 = vpop.permute.xlu0 %220
    %222 = vrot.lane.b32.xlu0 %v202, 34
    %v223 = vpop.permute.xlu0 %222
    %224 = vrot.lane.b32.xlu0 %v203, 34
    %v225 = vpop.permute.xlu0 %224
    %226 = vrot.lane.b32.xlu0 %v204, 34
    %v227 = vpop.permute.xlu0 %226
    %228 = vrot.lane.b32.xlu0 %v205, 34
    %v229 = vpop.permute.xlu0 %228
    %vm230 = vcmask 277504
    %v231 = vsel %vm230, %v215, %v217
    %v232 = vsel %vm230, %v219, %v221
    %v233 = vsel %vm230, %v223, %v225
    %v234 = vsel %vm230, %v227, %v229
    %v247 = vsel %vm230, 0.0, %v215
    %v248 = vsel %vm230, 0.0, %v219
    %v249 = vsel %vm230, 0.0, %v223
    %v250 = vsel %vm230, 0.0, %v227
    %v251 = vsel %vm230, %v217, 0.0
    %v252 = vsel %vm230, %v221, 0.0
    %v253 = vsel %vm230, %v225, 0.0
    %v254 = vsel %vm230, %v229, 0.0
    %v255 = vlaneseq
    %v256 = vand.u32 %v255, 127
    %v257 = vadd.s32 %v256, 128
    %vm258 = vcmp.lt.s32.totalorder %v256, 0
    %v259 = vsub.s32 0, %v256
    %v260 = vsel %vm258, %v259, %v256
    %v261 = vshrl.u32 %v260, 4
    %v262 = vand.u32 %v260, 15
    %v263 = vsub.s32 0, %v262
    %v264 = vsel %vm258, %v263, %v262
    %vm265 = vcmp.lt.s32.totalorder %v257, 0
    %v266 = vsub.s32 0, %v257
    %v267 = vsel %vm265, %v266, %v257
    %v268 = vshrl.u32 %v267, 4
    %v269 = vand.u32 %v267, 15
    %v270 = vsub.s32 0, %v269
    %v271 = vsel %vm265, %v270, %v269
    %vm272 = vcmp.ne.s32.totalorder %v264, 0
    %vm273 = vcmp.ne.s32.totalorder %v271, 0
    %vm274 = vcmp.lt.s32.totalorder %v264, 0
    %vm275 = vcmp.lt.s32.totalorder %v271, 0
    %vm276 = vmand %vm274, %vm272
    %vm277 = vmand %vm275, %vm273
    %v278 = vadd.s32 %v264, 16
    %v279 = vadd.s32 %v271, 16
    %v280 = vsel %vm276, %v278, %v264
    %v281 = vsel %vm277, %v279, %v271
    %282 = vset.pattern.permute.xlu0 0
    %283 = vperm.xlu0 %282, %v36
    %v284 = vpop.permute.xlu0 %283
    %286 = vset.pattern.permute.xlu0 0
    %287 = vperm.xlu0 %286, %v37
    %v288 = vpop.permute.xlu0 %287
    %v290 = vmul.f32 %v247, %v284
    %v291 = vmul.f32 %v231, %v284
    %v292 = vmul.f32 %v251, %v284
    %v293 = vmul.f32 %v248, %v288
    %v294 = vmul.f32 %v232, %v288
    %v295 = vmul.f32 %v252, %v288
    %v296 = vmul.f32 %v249, %v284
    %v297 = vmul.f32 %v233, %v284
    %v298 = vmul.f32 %v253, %v284
    %v299 = vmul.f32 %v250, %v288
    %v300 = vmul.f32 %v234, %v288
    %v301 = vmul.f32 %v254, %v288
    %v302 = vadd.f32 %v290, 0.0
    %v303 = vadd.f32 %v291, 0.0
    %v304 = vadd.f32 %v292, 0.0
    %v305 = vadd.f32 %v293, 0.0
    %v306 = vadd.f32 %v294, 0.0
    %v307 = vadd.f32 %v295, 0.0
    %v308 = vadd.f32 %v296, 0.0
    %v309 = vadd.f32 %v297, 0.0
    %v310 = vadd.f32 %v298, 0.0
    %v311 = vadd.f32 %v299, 0.0
    %v312 = vadd.f32 %v300, 0.0
    %v313 = vadd.f32 %v301, 0.0
    %314 = vset.pattern.permute.xlu0 3
    %315 = vperm.xlu0 %314, %v36
    %v316 = vpop.permute.xlu0 %315
    %318 = vset.pattern.permute.xlu0 3
    %319 = vperm.xlu0 %318, %v37
    %v320 = vpop.permute.xlu0 %319
    %v322 = vmul.f32 %v247, %v316
    %v323 = vmul.f32 %v231, %v316
    %v324 = vmul.f32 %v251, %v316
    %v325 = vmul.f32 %v248, %v320
    %v326 = vmul.f32 %v232, %v320
    %v327 = vmul.f32 %v252, %v320
    %v328 = vmul.f32 %v249, %v316
    %v329 = vmul.f32 %v233, %v316
    %v330 = vmul.f32 %v253, %v316
    %v331 = vmul.f32 %v250, %v320
    %v332 = vmul.f32 %v234, %v320
    %v333 = vmul.f32 %v254, %v320
    %346 = vrot.lane.b32.xlu0 %v322, 112
    %v347 = vpop.permute.xlu0 %346
    %348 = vrot.lane.b32.xlu0 %v323, 112
    %v349 = vpop.permute.xlu0 %348
    %350 = vrot.lane.b32.xlu0 %v324, 112
    %v351 = vpop.permute.xlu0 %350
    %352 = vrot.lane.b32.xlu0 %v325, 112
    %v353 = vpop.permute.xlu0 %352
    %354 = vrot.lane.b32.xlu0 %v326, 112
    %v355 = vpop.permute.xlu0 %354
    %356 = vrot.lane.b32.xlu0 %v327, 112
    %v357 = vpop.permute.xlu0 %356
    %358 = vrot.lane.b32.xlu0 %v328, 112
    %v359 = vpop.permute.xlu0 %358
    %360 = vrot.lane.b32.xlu0 %v329, 112
    %v361 = vpop.permute.xlu0 %360
    %362 = vrot.lane.b32.xlu0 %v330, 112
    %v363 = vpop.permute.xlu0 %362
    %364 = vrot.lane.b32.xlu0 %v331, 112
    %v365 = vpop.permute.xlu0 %364
    %366 = vrot.lane.b32.xlu0 %v332, 112
    %v367 = vpop.permute.xlu0 %366
    %368 = vrot.lane.b32.xlu0 %v333, 112
    %v369 = vpop.permute.xlu0 %368
    %vm370 = vcmask 916480
    %v371 = vsel %vm370, %v347, %v349
    %v372 = vsel %vm370, %v349, %v351
    %v373 = vsel %vm370, %v353, %v355
    %v374 = vsel %vm370, %v355, %v357
    %v375 = vsel %vm370, %v359, %v361
    %v376 = vsel %vm370, %v361, %v363
    %v377 = vsel %vm370, %v365, %v367
    %v378 = vsel %vm370, %v367, %v369
    %v391 = vadd.f32 %v302, %v371
    %v392 = vadd.f32 %v303, %v372
    %v393 = vadd.f32 %v304, %v351
    %v394 = vadd.f32 %v305, %v373
    %v395 = vadd.f32 %v306, %v374
    %v396 = vadd.f32 %v307, %v357
    %v397 = vadd.f32 %v308, %v375
    %v398 = vadd.f32 %v309, %v376
    %v399 = vadd.f32 %v310, %v363
    %v400 = vadd.f32 %v311, %v377
    %v401 = vadd.f32 %v312, %v378
    %v402 = vadd.f32 %v313, %v369
    %403 = vset.pattern.permute.xlu0 6
    %404 = vperm.xlu0 %403, %v36
    %v405 = vpop.permute.xlu0 %404
    %407 = vset.pattern.permute.xlu0 6
    %408 = vperm.xlu0 %407, %v37
    %v409 = vpop.permute.xlu0 %408
    %v411 = vmul.f32 %v247, %v405
    %v412 = vmul.f32 %v231, %v405
    %v413 = vmul.f32 %v251, %v405
    %v414 = vmul.f32 %v248, %v409
    %v415 = vmul.f32 %v232, %v409
    %v416 = vmul.f32 %v252, %v409
    %v417 = vmul.f32 %v249, %v405
    %v418 = vmul.f32 %v233, %v405
    %v419 = vmul.f32 %v253, %v405
    %v420 = vmul.f32 %v250, %v409
    %v421 = vmul.f32 %v234, %v409
    %v422 = vmul.f32 %v254, %v409
    %435 = vrot.lane.b32.xlu0 %v411, 96
    %v436 = vpop.permute.xlu0 %435
    %437 = vrot.lane.b32.xlu0 %v412, 96
    %v438 = vpop.permute.xlu0 %437
    %439 = vrot.lane.b32.xlu0 %v413, 96
    %v440 = vpop.permute.xlu0 %439
    %441 = vrot.lane.b32.xlu0 %v414, 96
    %v442 = vpop.permute.xlu0 %441
    %443 = vrot.lane.b32.xlu0 %v415, 96
    %v444 = vpop.permute.xlu0 %443
    %445 = vrot.lane.b32.xlu0 %v416, 96
    %v446 = vpop.permute.xlu0 %445
    %447 = vrot.lane.b32.xlu0 %v417, 96
    %v448 = vpop.permute.xlu0 %447
    %449 = vrot.lane.b32.xlu0 %v418, 96
    %v450 = vpop.permute.xlu0 %449
    %451 = vrot.lane.b32.xlu0 %v419, 96
    %v452 = vpop.permute.xlu0 %451
    %453 = vrot.lane.b32.xlu0 %v420, 96
    %v454 = vpop.permute.xlu0 %453
    %455 = vrot.lane.b32.xlu0 %v421, 96
    %v456 = vpop.permute.xlu0 %455
    %457 = vrot.lane.b32.xlu0 %v422, 96
    %v458 = vpop.permute.xlu0 %457
    %vm459 = vcmask 785408
    %v460 = vsel %vm459, %v436, %v438
    %v461 = vsel %vm459, %v438, %v440
    %v462 = vsel %vm459, %v442, %v444
    %v463 = vsel %vm459, %v444, %v446
    %v464 = vsel %vm459, %v448, %v450
    %v465 = vsel %vm459, %v450, %v452
    %v466 = vsel %vm459, %v454, %v456
    %v467 = vsel %vm459, %v456, %v458
    %v480 = vadd.f32 %v391, %v460
    %v481 = vadd.f32 %v392, %v461
    %v482 = vadd.f32 %v393, %v440
    %v483 = vadd.f32 %v394, %v462
    %v484 = vadd.f32 %v395, %v463
    %v485 = vadd.f32 %v396, %v446
    %v486 = vadd.f32 %v397, %v464
    %v487 = vadd.f32 %v398, %v465
    %v488 = vadd.f32 %v399, %v452
    %v489 = vadd.f32 %v400, %v466
    %v490 = vadd.f32 %v401, %v467
    %v491 = vadd.f32 %v402, %v458
    %vm492 = vcmp.ge.s32.totalorder %v280, 1
    %vm493 = vcmp.ge.s32.totalorder %v281, 1
    %v494 = vsel %vm492, 1, 0
    %v495 = vsel %vm493, 1, 0
    %vm496 = vcmp.eq.s32.totalorder %v494, 1
    %vm497 = vcmp.eq.s32.totalorder %v495, 1
    %510 = vrot.lane.b32.xlu0 %v480, 111
    %v511 = vpop.permute.xlu0 %510
    %512 = vrot.lane.b32.xlu0 %v481, 111
    %v513 = vpop.permute.xlu0 %512
    %514 = vrot.lane.b32.xlu0 %v482, 111
    %v515 = vpop.permute.xlu0 %514
    %516 = vrot.lane.b32.xlu0 %v483, 111
    %v517 = vpop.permute.xlu0 %516
    %518 = vrot.lane.b32.xlu0 %v484, 111
    %v519 = vpop.permute.xlu0 %518
    %520 = vrot.lane.b32.xlu0 %v485, 111
    %v521 = vpop.permute.xlu0 %520
    %522 = vrot.lane.b32.xlu0 %v486, 111
    %v523 = vpop.permute.xlu0 %522
    %524 = vrot.lane.b32.xlu0 %v487, 111
    %v525 = vpop.permute.xlu0 %524
    %526 = vrot.lane.b32.xlu0 %v488, 111
    %v527 = vpop.permute.xlu0 %526
    %528 = vrot.lane.b32.xlu0 %v489, 111
    %v529 = vpop.permute.xlu0 %528
    %530 = vrot.lane.b32.xlu0 %v490, 111
    %v531 = vpop.permute.xlu0 %530
    %532 = vrot.lane.b32.xlu0 %v491, 111
    %v533 = vpop.permute.xlu0 %532
    %vm534 = vcmask 908288
    %v535 = vsel %vm534, %v511, %v513
    %v536 = vsel %vm534, %v513, %v515
    %v537 = vsel %vm534, %v517, %v519
    %v538 = vsel %vm534, %v519, %v521
    %v539 = vsel %vm534, %v523, %v525
    %v540 = vsel %vm534, %v525, %v527
    %v541 = vsel %vm534, %v529, %v531
    %v542 = vsel %vm534, %v531, %v533
    %v551 = vsel %vm496, %v535, 0.0
    %v552 = vsel %vm497, %v536, 0.0
    %v553 = vsel %vm496, %v537, 0.0
    %v554 = vsel %vm497, %v538, 0.0
    %v555 = vsel %vm496, %v539, 0.0
    %v556 = vsel %vm497, %v540, 0.0
    %v557 = vsel %vm496, %v541, 0.0
    %v558 = vsel %vm497, %v542, 0.0
    %v559 = vadd.f32 %v551, 0.0
    %v560 = vadd.f32 %v552, 0.0
    %v561 = vadd.f32 %v553, 0.0
    %v562 = vadd.f32 %v554, 0.0
    %v563 = vadd.f32 %v555, 0.0
    %v564 = vadd.f32 %v556, 0.0
    %v565 = vadd.f32 %v557, 0.0
    %v566 = vadd.f32 %v558, 0.0
    %567 = vset.pattern.permute.xlu0 1
    %568 = vperm.xlu0 %567, %v36
    %v569 = vpop.permute.xlu0 %568
    %571 = vset.pattern.permute.xlu0 1
    %572 = vperm.xlu0 %571, %v37
    %v573 = vpop.permute.xlu0 %572
    %v575 = vmul.f32 %v247, %v569
    %v576 = vmul.f32 %v231, %v569
    %v577 = vmul.f32 %v251, %v569
    %v578 = vmul.f32 %v248, %v573
    %v579 = vmul.f32 %v232, %v573
    %v580 = vmul.f32 %v252, %v573
    %v581 = vmul.f32 %v249, %v569
    %v582 = vmul.f32 %v233, %v569
    %v583 = vmul.f32 %v253, %v569
    %v584 = vmul.f32 %v250, %v573
    %v585 = vmul.f32 %v234, %v573
    %v586 = vmul.f32 %v254, %v573
    %v587 = vadd.f32 %v575, 0.0
    %v588 = vadd.f32 %v576, 0.0
    %v589 = vadd.f32 %v577, 0.0
    %v590 = vadd.f32 %v578, 0.0
    %v591 = vadd.f32 %v579, 0.0
    %v592 = vadd.f32 %v580, 0.0
    %v593 = vadd.f32 %v581, 0.0
    %v594 = vadd.f32 %v582, 0.0
    %v595 = vadd.f32 %v583, 0.0
    %v596 = vadd.f32 %v584, 0.0
    %v597 = vadd.f32 %v585, 0.0
    %v598 = vadd.f32 %v586, 0.0
    %599 = vset.pattern.permute.xlu0 4
    %600 = vperm.xlu0 %599, %v36
    %v601 = vpop.permute.xlu0 %600
    %603 = vset.pattern.permute.xlu0 4
    %604 = vperm.xlu0 %603, %v37
    %v605 = vpop.permute.xlu0 %604
    %v607 = vmul.f32 %v247, %v601
    %v608 = vmul.f32 %v231, %v601
    %v609 = vmul.f32 %v251, %v601
    %v610 = vmul.f32 %v248, %v605
    %v611 = vmul.f32 %v232, %v605
    %v612 = vmul.f32 %v252, %v605
    %v613 = vmul.f32 %v249, %v601
    %v614 = vmul.f32 %v233, %v601
    %v615 = vmul.f32 %v253, %v601
    %v616 = vmul.f32 %v250, %v605
    %v617 = vmul.f32 %v234, %v605
    %v618 = vmul.f32 %v254, %v605
    %631 = vrot.lane.b32.xlu0 %v607, 112
    %v632 = vpop.permute.xlu0 %631
    %633 = vrot.lane.b32.xlu0 %v608, 112
    %v634 = vpop.permute.xlu0 %633
    %635 = vrot.lane.b32.xlu0 %v609, 112
    %v636 = vpop.permute.xlu0 %635
    %637 = vrot.lane.b32.xlu0 %v610, 112
    %v638 = vpop.permute.xlu0 %637
    %639 = vrot.lane.b32.xlu0 %v611, 112
    %v640 = vpop.permute.xlu0 %639
    %641 = vrot.lane.b32.xlu0 %v612, 112
    %v642 = vpop.permute.xlu0 %641
    %643 = vrot.lane.b32.xlu0 %v613, 112
    %v644 = vpop.permute.xlu0 %643
    %645 = vrot.lane.b32.xlu0 %v614, 112
    %v646 = vpop.permute.xlu0 %645
    %647 = vrot.lane.b32.xlu0 %v615, 112
    %v648 = vpop.permute.xlu0 %647
    %649 = vrot.lane.b32.xlu0 %v616, 112
    %v650 = vpop.permute.xlu0 %649
    %651 = vrot.lane.b32.xlu0 %v617, 112
    %v652 = vpop.permute.xlu0 %651
    %653 = vrot.lane.b32.xlu0 %v618, 112
    %v654 = vpop.permute.xlu0 %653
    %v655 = vsel %vm370, %v632, %v634
    %v656 = vsel %vm370, %v634, %v636
    %v657 = vsel %vm370, %v638, %v640
    %v658 = vsel %vm370, %v640, %v642
    %v659 = vsel %vm370, %v644, %v646
    %v660 = vsel %vm370, %v646, %v648
    %v661 = vsel %vm370, %v650, %v652
    %v662 = vsel %vm370, %v652, %v654
    %v675 = vadd.f32 %v587, %v655
    %v676 = vadd.f32 %v588, %v656
    %v677 = vadd.f32 %v589, %v636
    %v678 = vadd.f32 %v590, %v657
    %v679 = vadd.f32 %v591, %v658
    %v680 = vadd.f32 %v592, %v642
    %v681 = vadd.f32 %v593, %v659
    %v682 = vadd.f32 %v594, %v660
    %v683 = vadd.f32 %v595, %v648
    %v684 = vadd.f32 %v596, %v661
    %v685 = vadd.f32 %v597, %v662
    %v686 = vadd.f32 %v598, %v654
    %687 = vset.pattern.permute.xlu0 7
    %688 = vperm.xlu0 %687, %v36
    %v689 = vpop.permute.xlu0 %688
    %691 = vset.pattern.permute.xlu0 7
    %692 = vperm.xlu0 %691, %v37
    %v693 = vpop.permute.xlu0 %692
    %v695 = vmul.f32 %v247, %v689
    %v696 = vmul.f32 %v231, %v689
    %v697 = vmul.f32 %v251, %v689
    %v698 = vmul.f32 %v248, %v693
    %v699 = vmul.f32 %v232, %v693
    %v700 = vmul.f32 %v252, %v693
    %v701 = vmul.f32 %v249, %v689
    %v702 = vmul.f32 %v233, %v689
    %v703 = vmul.f32 %v253, %v689
    %v704 = vmul.f32 %v250, %v693
    %v705 = vmul.f32 %v234, %v693
    %v706 = vmul.f32 %v254, %v693
    %719 = vrot.lane.b32.xlu0 %v695, 96
    %v720 = vpop.permute.xlu0 %719
    %721 = vrot.lane.b32.xlu0 %v696, 96
    %v722 = vpop.permute.xlu0 %721
    %723 = vrot.lane.b32.xlu0 %v697, 96
    %v724 = vpop.permute.xlu0 %723
    %725 = vrot.lane.b32.xlu0 %v698, 96
    %v726 = vpop.permute.xlu0 %725
    %727 = vrot.lane.b32.xlu0 %v699, 96
    %v728 = vpop.permute.xlu0 %727
    %729 = vrot.lane.b32.xlu0 %v700, 96
    %v730 = vpop.permute.xlu0 %729
    %731 = vrot.lane.b32.xlu0 %v701, 96
    %v732 = vpop.permute.xlu0 %731
    %733 = vrot.lane.b32.xlu0 %v702, 96
    %v734 = vpop.permute.xlu0 %733
    %735 = vrot.lane.b32.xlu0 %v703, 96
    %v736 = vpop.permute.xlu0 %735
    %737 = vrot.lane.b32.xlu0 %v704, 96
    %v738 = vpop.permute.xlu0 %737
    %739 = vrot.lane.b32.xlu0 %v705, 96
    %v740 = vpop.permute.xlu0 %739
    %741 = vrot.lane.b32.xlu0 %v706, 96
    %v742 = vpop.permute.xlu0 %741
    %v743 = vsel %vm459, %v720, %v722
    %v744 = vsel %vm459, %v722, %v724
    %v745 = vsel %vm459, %v726, %v728
    %v746 = vsel %vm459, %v728, %v730
    %v747 = vsel %vm459, %v732, %v734
    %v748 = vsel %vm459, %v734, %v736
    %v749 = vsel %vm459, %v738, %v740
    %v750 = vsel %vm459, %v740, %v742
    %v763 = vadd.f32 %v675, %v743
    %v764 = vadd.f32 %v676, %v744
    %v765 = vadd.f32 %v677, %v724
    %v766 = vadd.f32 %v678, %v745
    %v767 = vadd.f32 %v679, %v746
    %v768 = vadd.f32 %v680, %v730
    %v769 = vadd.f32 %v681, %v747
    %v770 = vadd.f32 %v682, %v748
    %v771 = vadd.f32 %v683, %v736
    %v772 = vadd.f32 %v684, %v749
    %v773 = vadd.f32 %v685, %v750
    %v774 = vadd.f32 %v686, %v742
    %787 = vrot.lane.b32.xlu0 %v763, 110
    %v788 = vpop.permute.xlu0 %787
    %789 = vrot.lane.b32.xlu0 %v764, 110
    %v790 = vpop.permute.xlu0 %789
    %791 = vrot.lane.b32.xlu0 %v765, 110
    %v792 = vpop.permute.xlu0 %791
    %793 = vrot.lane.b32.xlu0 %v766, 110
    %v794 = vpop.permute.xlu0 %793
    %795 = vrot.lane.b32.xlu0 %v767, 110
    %v796 = vpop.permute.xlu0 %795
    %797 = vrot.lane.b32.xlu0 %v768, 110
    %v798 = vpop.permute.xlu0 %797
    %799 = vrot.lane.b32.xlu0 %v769, 110
    %v800 = vpop.permute.xlu0 %799
    %801 = vrot.lane.b32.xlu0 %v770, 110
    %v802 = vpop.permute.xlu0 %801
    %803 = vrot.lane.b32.xlu0 %v771, 110
    %v804 = vpop.permute.xlu0 %803
    %805 = vrot.lane.b32.xlu0 %v772, 110
    %v806 = vpop.permute.xlu0 %805
    %807 = vrot.lane.b32.xlu0 %v773, 110
    %v808 = vpop.permute.xlu0 %807
    %809 = vrot.lane.b32.xlu0 %v774, 110
    %v810 = vpop.permute.xlu0 %809
    %vm811 = vcmask 900096
    %v812 = vsel %vm811, %v788, %v790
    %v813 = vsel %vm811, %v790, %v792
    %v814 = vsel %vm811, %v794, %v796
    %v815 = vsel %vm811, %v796, %v798
    %v816 = vsel %vm811, %v800, %v802
    %v817 = vsel %vm811, %v802, %v804
    %v818 = vsel %vm811, %v806, %v808
    %v819 = vsel %vm811, %v808, %v810
    %v828 = vadd.f32 %v559, %v812
    %v829 = vadd.f32 %v560, %v813
    %v830 = vadd.f32 %v561, %v814
    %v831 = vadd.f32 %v562, %v815
    %v832 = vadd.f32 %v563, %v816
    %v833 = vadd.f32 %v564, %v817
    %v834 = vadd.f32 %v565, %v818
    %v835 = vadd.f32 %v566, %v819
    %836 = vset.pattern.permute.xlu0 2
    %837 = vperm.xlu0 %836, %v36
    %v838 = vpop.permute.xlu0 %837
    %840 = vset.pattern.permute.xlu0 2
    %841 = vperm.xlu0 %840, %v37
    %v842 = vpop.permute.xlu0 %841
    %v844 = vmul.f32 %v247, %v838
    %v845 = vmul.f32 %v231, %v838
    %v846 = vmul.f32 %v251, %v838
    %v847 = vmul.f32 %v248, %v842
    %v848 = vmul.f32 %v232, %v842
    %v849 = vmul.f32 %v252, %v842
    %v850 = vmul.f32 %v249, %v838
    %v851 = vmul.f32 %v233, %v838
    %v852 = vmul.f32 %v253, %v838
    %v853 = vmul.f32 %v250, %v842
    %v854 = vmul.f32 %v234, %v842
    %v855 = vmul.f32 %v254, %v842
    %v856 = vadd.f32 %v844, 0.0
    %v857 = vadd.f32 %v845, 0.0
    %v858 = vadd.f32 %v846, 0.0
    %v859 = vadd.f32 %v847, 0.0
    %v860 = vadd.f32 %v848, 0.0
    %v861 = vadd.f32 %v849, 0.0
    %v862 = vadd.f32 %v850, 0.0
    %v863 = vadd.f32 %v851, 0.0
    %v864 = vadd.f32 %v852, 0.0
    %v865 = vadd.f32 %v853, 0.0
    %v866 = vadd.f32 %v854, 0.0
    %v867 = vadd.f32 %v855, 0.0
    %868 = vset.pattern.permute.xlu0 5
    %869 = vperm.xlu0 %868, %v36
    %v870 = vpop.permute.xlu0 %869
    %872 = vset.pattern.permute.xlu0 5
    %873 = vperm.xlu0 %872, %v37
    %v874 = vpop.permute.xlu0 %873
    %v876 = vmul.f32 %v247, %v870
    %v877 = vmul.f32 %v231, %v870
    %v878 = vmul.f32 %v251, %v870
    %v879 = vmul.f32 %v248, %v874
    %v880 = vmul.f32 %v232, %v874
    %v881 = vmul.f32 %v252, %v874
    %v882 = vmul.f32 %v249, %v870
    %v883 = vmul.f32 %v233, %v870
    %v884 = vmul.f32 %v253, %v870
    %v885 = vmul.f32 %v250, %v874
    %v886 = vmul.f32 %v234, %v874
    %v887 = vmul.f32 %v254, %v874
    %900 = vrot.lane.b32.xlu0 %v876, 112
    %v901 = vpop.permute.xlu0 %900
    %902 = vrot.lane.b32.xlu0 %v877, 112
    %v903 = vpop.permute.xlu0 %902
    %904 = vrot.lane.b32.xlu0 %v878, 112
    %v905 = vpop.permute.xlu0 %904
    %906 = vrot.lane.b32.xlu0 %v879, 112
    %v907 = vpop.permute.xlu0 %906
    %908 = vrot.lane.b32.xlu0 %v880, 112
    %v909 = vpop.permute.xlu0 %908
    %910 = vrot.lane.b32.xlu0 %v881, 112
    %v911 = vpop.permute.xlu0 %910
    %912 = vrot.lane.b32.xlu0 %v882, 112
    %v913 = vpop.permute.xlu0 %912
    %914 = vrot.lane.b32.xlu0 %v883, 112
    %v915 = vpop.permute.xlu0 %914
    %916 = vrot.lane.b32.xlu0 %v884, 112
    %v917 = vpop.permute.xlu0 %916
    %918 = vrot.lane.b32.xlu0 %v885, 112
    %v919 = vpop.permute.xlu0 %918
    %920 = vrot.lane.b32.xlu0 %v886, 112
    %v921 = vpop.permute.xlu0 %920
    %922 = vrot.lane.b32.xlu0 %v887, 112
    %v923 = vpop.permute.xlu0 %922
    %v924 = vsel %vm370, %v901, %v903
    %v925 = vsel %vm370, %v903, %v905
    %v926 = vsel %vm370, %v907, %v909
    %v927 = vsel %vm370, %v909, %v911
    %v928 = vsel %vm370, %v913, %v915
    %v929 = vsel %vm370, %v915, %v917
    %v930 = vsel %vm370, %v919, %v921
    %v931 = vsel %vm370, %v921, %v923
    %v944 = vadd.f32 %v856, %v924
    %v945 = vadd.f32 %v857, %v925
    %v946 = vadd.f32 %v858, %v905
    %v947 = vadd.f32 %v859, %v926
    %v948 = vadd.f32 %v860, %v927
    %v949 = vadd.f32 %v861, %v911
    %v950 = vadd.f32 %v862, %v928
    %v951 = vadd.f32 %v863, %v929
    %v952 = vadd.f32 %v864, %v917
    %v953 = vadd.f32 %v865, %v930
    %v954 = vadd.f32 %v866, %v931
    %v955 = vadd.f32 %v867, %v923
    %956 = vset.pattern.permute.xlu0 8
    %957 = vperm.xlu0 %956, %v36
    %v958 = vpop.permute.xlu0 %957
    %960 = vset.pattern.permute.xlu0 8
    %961 = vperm.xlu0 %960, %v37
    %v962 = vpop.permute.xlu0 %961
    %v964 = vmul.f32 %v247, %v958
    %v965 = vmul.f32 %v231, %v958
    %v966 = vmul.f32 %v251, %v958
    %v967 = vmul.f32 %v248, %v962
    %v968 = vmul.f32 %v232, %v962
    %v969 = vmul.f32 %v252, %v962
    %v970 = vmul.f32 %v249, %v958
    %v971 = vmul.f32 %v233, %v958
    %v972 = vmul.f32 %v253, %v958
    %v973 = vmul.f32 %v250, %v962
    %v974 = vmul.f32 %v234, %v962
    %v975 = vmul.f32 %v254, %v962
    %988 = vrot.lane.b32.xlu0 %v964, 96
    %v989 = vpop.permute.xlu0 %988
    %990 = vrot.lane.b32.xlu0 %v965, 96
    %v991 = vpop.permute.xlu0 %990
    %992 = vrot.lane.b32.xlu0 %v966, 96
    %v993 = vpop.permute.xlu0 %992
    %994 = vrot.lane.b32.xlu0 %v967, 96
    %v995 = vpop.permute.xlu0 %994
    %996 = vrot.lane.b32.xlu0 %v968, 96
    %v997 = vpop.permute.xlu0 %996
    %998 = vrot.lane.b32.xlu0 %v969, 96
    %v999 = vpop.permute.xlu0 %998
    %1000 = vrot.lane.b32.xlu0 %v970, 96
    %v1001 = vpop.permute.xlu0 %1000
    %1002 = vrot.lane.b32.xlu0 %v971, 96
    %v1003 = vpop.permute.xlu0 %1002
    %1004 = vrot.lane.b32.xlu0 %v972, 96
    %v1005 = vpop.permute.xlu0 %1004
    %1006 = vrot.lane.b32.xlu0 %v973, 96
    %v1007 = vpop.permute.xlu0 %1006
    %1008 = vrot.lane.b32.xlu0 %v974, 96
    %v1009 = vpop.permute.xlu0 %1008
    %1010 = vrot.lane.b32.xlu0 %v975, 96
    %v1011 = vpop.permute.xlu0 %1010
    %v1012 = vsel %vm459, %v989, %v991
    %v1013 = vsel %vm459, %v991, %v993
    %v1014 = vsel %vm459, %v995, %v997
    %v1015 = vsel %vm459, %v997, %v999
    %v1016 = vsel %vm459, %v1001, %v1003
    %v1017 = vsel %vm459, %v1003, %v1005
    %v1018 = vsel %vm459, %v1007, %v1009
    %v1019 = vsel %vm459, %v1009, %v1011
    %v1032 = vadd.f32 %v944, %v1012
    %v1033 = vadd.f32 %v945, %v1013
    %v1034 = vadd.f32 %v946, %v993
    %v1035 = vadd.f32 %v947, %v1014
    %v1036 = vadd.f32 %v948, %v1015
    %v1037 = vadd.f32 %v949, %v999
    %v1038 = vadd.f32 %v950, %v1016
    %v1039 = vadd.f32 %v951, %v1017
    %v1040 = vadd.f32 %v952, %v1005
    %v1041 = vadd.f32 %v953, %v1018
    %v1042 = vadd.f32 %v954, %v1019
    %v1043 = vadd.f32 %v955, %v1011
    %vm1044 = vcmp.lt.s32.totalorder %v280, 15
    %vm1045 = vcmp.lt.s32.totalorder %v281, 15
    %v1046 = vsel %vm1044, 1, 0
    %v1047 = vsel %vm1045, 1, 0
    %vm1048 = vcmp.eq.s32.totalorder %v1046, 1
    %vm1049 = vcmp.eq.s32.totalorder %v1047, 1
    %1062 = vrot.lane.b32.xlu0 %v1032, 109
    %v1063 = vpop.permute.xlu0 %1062
    %1064 = vrot.lane.b32.xlu0 %v1033, 109
    %v1065 = vpop.permute.xlu0 %1064
    %1066 = vrot.lane.b32.xlu0 %v1034, 109
    %v1067 = vpop.permute.xlu0 %1066
    %1068 = vrot.lane.b32.xlu0 %v1035, 109
    %v1069 = vpop.permute.xlu0 %1068
    %1070 = vrot.lane.b32.xlu0 %v1036, 109
    %v1071 = vpop.permute.xlu0 %1070
    %1072 = vrot.lane.b32.xlu0 %v1037, 109
    %v1073 = vpop.permute.xlu0 %1072
    %1074 = vrot.lane.b32.xlu0 %v1038, 109
    %v1075 = vpop.permute.xlu0 %1074
    %1076 = vrot.lane.b32.xlu0 %v1039, 109
    %v1077 = vpop.permute.xlu0 %1076
    %1078 = vrot.lane.b32.xlu0 %v1040, 109
    %v1079 = vpop.permute.xlu0 %1078
    %1080 = vrot.lane.b32.xlu0 %v1041, 109
    %v1081 = vpop.permute.xlu0 %1080
    %1082 = vrot.lane.b32.xlu0 %v1042, 109
    %v1083 = vpop.permute.xlu0 %1082
    %1084 = vrot.lane.b32.xlu0 %v1043, 109
    %v1085 = vpop.permute.xlu0 %1084
    %vm1086 = vcmask 891904
    %v1087 = vsel %vm1086, %v1063, %v1065
    %v1088 = vsel %vm1086, %v1065, %v1067
    %v1089 = vsel %vm1086, %v1069, %v1071
    %v1090 = vsel %vm1086, %v1071, %v1073
    %v1091 = vsel %vm1086, %v1075, %v1077
    %v1092 = vsel %vm1086, %v1077, %v1079
    %v1093 = vsel %vm1086, %v1081, %v1083
    %v1094 = vsel %vm1086, %v1083, %v1085
    %v1103 = vsel %vm1048, %v1087, 0.0
    %v1104 = vsel %vm1049, %v1088, 0.0
    %v1105 = vsel %vm1048, %v1089, 0.0
    %v1106 = vsel %vm1049, %v1090, 0.0
    %v1107 = vsel %vm1048, %v1091, 0.0
    %v1108 = vsel %vm1049, %v1092, 0.0
    %v1109 = vsel %vm1048, %v1093, 0.0
    %v1110 = vsel %vm1049, %v1094, 0.0
    %v1111 = vadd.f32 %v828, %v1103
    %v1112 = vadd.f32 %v829, %v1104
    %v1113 = vadd.f32 %v830, %v1105
    %v1114 = vadd.f32 %v831, %v1106
    %v1115 = vadd.f32 %v832, %v1107
    %v1116 = vadd.f32 %v833, %v1108
    %v1117 = vadd.f32 %v834, %v1109
    %v1118 = vadd.f32 %v835, %v1110
    %1119 = vset.pattern.permute.xlu0 9
    %1120 = vperm.xlu0 %1119, %v36
    %v1121 = vpop.permute.xlu0 %1120
    %1123 = vset.pattern.permute.xlu0 9
    %1124 = vperm.xlu0 %1123, %v37
    %v1125 = vpop.permute.xlu0 %1124
    %v1127 = vmul.f32 %v247, %v1121
    %v1128 = vmul.f32 %v231, %v1121
    %v1129 = vmul.f32 %v248, %v1125
    %v1130 = vmul.f32 %v232, %v1125
    %v1131 = vmul.f32 %v249, %v1121
    %v1132 = vmul.f32 %v233, %v1121
    %v1133 = vmul.f32 %v250, %v1125
    %v1134 = vmul.f32 %v234, %v1125
    %v1135 = vadd.f32 %v1127, 0.0
    %v1136 = vadd.f32 %v1128, 0.0
    %v1137 = vadd.f32 %v1129, 0.0
    %v1138 = vadd.f32 %v1130, 0.0
    %v1139 = vadd.f32 %v1131, 0.0
    %v1140 = vadd.f32 %v1132, 0.0
    %v1141 = vadd.f32 %v1133, 0.0
    %v1142 = vadd.f32 %v1134, 0.0
    %1143 = vset.pattern.permute.xlu0 12
    %1144 = vperm.xlu0 %1143, %v36
    %v1145 = vpop.permute.xlu0 %1144
    %1147 = vset.pattern.permute.xlu0 12
    %1148 = vperm.xlu0 %1147, %v37
    %v1149 = vpop.permute.xlu0 %1148
    %v1151 = vmul.f32 %v247, %v1145
    %v1152 = vmul.f32 %v231, %v1145
    %v1153 = vmul.f32 %v251, %v1145
    %v1154 = vmul.f32 %v248, %v1149
    %v1155 = vmul.f32 %v232, %v1149
    %v1156 = vmul.f32 %v252, %v1149
    %v1157 = vmul.f32 %v249, %v1145
    %v1158 = vmul.f32 %v233, %v1145
    %v1159 = vmul.f32 %v253, %v1145
    %v1160 = vmul.f32 %v250, %v1149
    %v1161 = vmul.f32 %v234, %v1149
    %v1162 = vmul.f32 %v254, %v1149
    %1175 = vrot.lane.b32.xlu0 %v1151, 96
    %v1176 = vpop.permute.xlu0 %1175
    %1177 = vrot.lane.b32.xlu0 %v1152, 96
    %v1178 = vpop.permute.xlu0 %1177
    %1179 = vrot.lane.b32.xlu0 %v1153, 96
    %v1180 = vpop.permute.xlu0 %1179
    %1181 = vrot.lane.b32.xlu0 %v1154, 96
    %v1182 = vpop.permute.xlu0 %1181
    %1183 = vrot.lane.b32.xlu0 %v1155, 96
    %v1184 = vpop.permute.xlu0 %1183
    %1185 = vrot.lane.b32.xlu0 %v1156, 96
    %v1186 = vpop.permute.xlu0 %1185
    %1187 = vrot.lane.b32.xlu0 %v1157, 96
    %v1188 = vpop.permute.xlu0 %1187
    %1189 = vrot.lane.b32.xlu0 %v1158, 96
    %v1190 = vpop.permute.xlu0 %1189
    %1191 = vrot.lane.b32.xlu0 %v1159, 96
    %v1192 = vpop.permute.xlu0 %1191
    %1193 = vrot.lane.b32.xlu0 %v1160, 96
    %v1194 = vpop.permute.xlu0 %1193
    %1195 = vrot.lane.b32.xlu0 %v1161, 96
    %v1196 = vpop.permute.xlu0 %1195
    %1197 = vrot.lane.b32.xlu0 %v1162, 96
    %v1198 = vpop.permute.xlu0 %1197
    %v1199 = vsel %vm459, %v1176, %v1178
    %v1200 = vsel %vm459, %v1178, %v1180
    %v1201 = vsel %vm459, %v1182, %v1184
    %v1202 = vsel %vm459, %v1184, %v1186
    %v1203 = vsel %vm459, %v1188, %v1190
    %v1204 = vsel %vm459, %v1190, %v1192
    %v1205 = vsel %vm459, %v1194, %v1196
    %v1206 = vsel %vm459, %v1196, %v1198
    %v1215 = vadd.f32 %v1135, %v1199
    %v1216 = vadd.f32 %v1136, %v1200
    %v1217 = vadd.f32 %v1137, %v1201
    %v1218 = vadd.f32 %v1138, %v1202
    %v1219 = vadd.f32 %v1139, %v1203
    %v1220 = vadd.f32 %v1140, %v1204
    %v1221 = vadd.f32 %v1141, %v1205
    %v1222 = vadd.f32 %v1142, %v1206
    %1223 = vset.pattern.permute.xlu0 15
    %1224 = vperm.xlu0 %1223, %v36
    %v1225 = vpop.permute.xlu0 %1224
    %1227 = vset.pattern.permute.xlu0 15
    %1228 = vperm.xlu0 %1227, %v37
    %v1229 = vpop.permute.xlu0 %1228
    %v1231 = vmul.f32 %v247, %v1225
    %v1232 = vmul.f32 %v231, %v1225
    %v1233 = vmul.f32 %v251, %v1225
    %v1234 = vmul.f32 %v248, %v1229
    %v1235 = vmul.f32 %v232, %v1229
    %v1236 = vmul.f32 %v252, %v1229
    %v1237 = vmul.f32 %v249, %v1225
    %v1238 = vmul.f32 %v233, %v1225
    %v1239 = vmul.f32 %v253, %v1225
    %v1240 = vmul.f32 %v250, %v1229
    %v1241 = vmul.f32 %v234, %v1229
    %v1242 = vmul.f32 %v254, %v1229
    %1255 = vrot.lane.b32.xlu0 %v1231, 64
    %v1256 = vpop.permute.xlu0 %1255
    %1257 = vrot.lane.b32.xlu0 %v1232, 64
    %v1258 = vpop.permute.xlu0 %1257
    %1259 = vrot.lane.b32.xlu0 %v1233, 64
    %v1260 = vpop.permute.xlu0 %1259
    %1261 = vrot.lane.b32.xlu0 %v1234, 64
    %v1262 = vpop.permute.xlu0 %1261
    %1263 = vrot.lane.b32.xlu0 %v1235, 64
    %v1264 = vpop.permute.xlu0 %1263
    %1265 = vrot.lane.b32.xlu0 %v1236, 64
    %v1266 = vpop.permute.xlu0 %1265
    %1267 = vrot.lane.b32.xlu0 %v1237, 64
    %v1268 = vpop.permute.xlu0 %1267
    %1269 = vrot.lane.b32.xlu0 %v1238, 64
    %v1270 = vpop.permute.xlu0 %1269
    %1271 = vrot.lane.b32.xlu0 %v1239, 64
    %v1272 = vpop.permute.xlu0 %1271
    %1273 = vrot.lane.b32.xlu0 %v1240, 64
    %v1274 = vpop.permute.xlu0 %1273
    %1275 = vrot.lane.b32.xlu0 %v1241, 64
    %v1276 = vpop.permute.xlu0 %1275
    %1277 = vrot.lane.b32.xlu0 %v1242, 64
    %v1278 = vpop.permute.xlu0 %1277
    %vm1279 = vcmask 523264
    %v1280 = vsel %vm1279, %v1256, %v1258
    %v1281 = vsel %vm1279, %v1258, %v1260
    %v1282 = vsel %vm1279, %v1262, %v1264
    %v1283 = vsel %vm1279, %v1264, %v1266
    %v1284 = vsel %vm1279, %v1268, %v1270
    %v1285 = vsel %vm1279, %v1270, %v1272
    %v1286 = vsel %vm1279, %v1274, %v1276
    %v1287 = vsel %vm1279, %v1276, %v1278
    %v1296 = vadd.f32 %v1215, %v1280
    %v1297 = vadd.f32 %v1216, %v1281
    %v1298 = vadd.f32 %v1217, %v1282
    %v1299 = vadd.f32 %v1218, %v1283
    %v1300 = vadd.f32 %v1219, %v1284
    %v1301 = vadd.f32 %v1220, %v1285
    %v1302 = vadd.f32 %v1221, %v1286
    %v1303 = vadd.f32 %v1222, %v1287
    %vm1304 = vcmp.ge.s32.totalorder %v280, 2
    %vm1305 = vcmp.ge.s32.totalorder %v281, 2
    %v1306 = vsel %vm1304, 1, 0
    %v1307 = vsel %vm1305, 1, 0
    %vm1308 = vcmp.eq.s32.totalorder %v1306, 1
    %vm1309 = vcmp.eq.s32.totalorder %v1307, 1
    %v1310 = vsel %vm1308, %v1296, 0.0
    %v1311 = vsel %vm1309, %v1297, 0.0
    %v1312 = vsel %vm1308, %v1298, 0.0
    %v1313 = vsel %vm1309, %v1299, 0.0
    %v1314 = vsel %vm1308, %v1300, 0.0
    %v1315 = vsel %vm1309, %v1301, 0.0
    %v1316 = vsel %vm1308, %v1302, 0.0
    %v1317 = vsel %vm1309, %v1303, 0.0
    %v1318 = vadd.f32 %v1310, 0.0
    %v1319 = vadd.f32 %v1311, 0.0
    %v1320 = vadd.f32 %v1312, 0.0
    %v1321 = vadd.f32 %v1313, 0.0
    %v1322 = vadd.f32 %v1314, 0.0
    %v1323 = vadd.f32 %v1315, 0.0
    %v1324 = vadd.f32 %v1316, 0.0
    %v1325 = vadd.f32 %v1317, 0.0
    %1326 = vset.pattern.permute.xlu0 10
    %1327 = vperm.xlu0 %1326, %v36
    %v1328 = vpop.permute.xlu0 %1327
    %1330 = vset.pattern.permute.xlu0 10
    %1331 = vperm.xlu0 %1330, %v37
    %v1332 = vpop.permute.xlu0 %1331
    %v1334 = vmul.f32 %v247, %v1328
    %v1335 = vmul.f32 %v231, %v1328
    %v1336 = vmul.f32 %v251, %v1328
    %v1337 = vmul.f32 %v248, %v1332
    %v1338 = vmul.f32 %v232, %v1332
    %v1339 = vmul.f32 %v252, %v1332
    %v1340 = vmul.f32 %v249, %v1328
    %v1341 = vmul.f32 %v233, %v1328
    %v1342 = vmul.f32 %v253, %v1328
    %v1343 = vmul.f32 %v250, %v1332
    %v1344 = vmul.f32 %v234, %v1332
    %v1345 = vmul.f32 %v254, %v1332
    %v1346 = vadd.f32 %v1334, 0.0
    %v1347 = vadd.f32 %v1335, 0.0
    %v1348 = vadd.f32 %v1336, 0.0
    %v1349 = vadd.f32 %v1337, 0.0
    %v1350 = vadd.f32 %v1338, 0.0
    %v1351 = vadd.f32 %v1339, 0.0
    %v1352 = vadd.f32 %v1340, 0.0
    %v1353 = vadd.f32 %v1341, 0.0
    %v1354 = vadd.f32 %v1342, 0.0
    %v1355 = vadd.f32 %v1343, 0.0
    %v1356 = vadd.f32 %v1344, 0.0
    %v1357 = vadd.f32 %v1345, 0.0
    %1358 = vset.pattern.permute.xlu0 13
    %1359 = vperm.xlu0 %1358, %v36
    %v1360 = vpop.permute.xlu0 %1359
    %1362 = vset.pattern.permute.xlu0 13
    %1363 = vperm.xlu0 %1362, %v37
    %v1364 = vpop.permute.xlu0 %1363
    %v1366 = vmul.f32 %v247, %v1360
    %v1367 = vmul.f32 %v231, %v1360
    %v1368 = vmul.f32 %v251, %v1360
    %v1369 = vmul.f32 %v248, %v1364
    %v1370 = vmul.f32 %v232, %v1364
    %v1371 = vmul.f32 %v252, %v1364
    %v1372 = vmul.f32 %v249, %v1360
    %v1373 = vmul.f32 %v233, %v1360
    %v1374 = vmul.f32 %v253, %v1360
    %v1375 = vmul.f32 %v250, %v1364
    %v1376 = vmul.f32 %v234, %v1364
    %v1377 = vmul.f32 %v254, %v1364
    %1390 = vrot.lane.b32.xlu0 %v1366, 96
    %v1391 = vpop.permute.xlu0 %1390
    %1392 = vrot.lane.b32.xlu0 %v1367, 96
    %v1393 = vpop.permute.xlu0 %1392
    %1394 = vrot.lane.b32.xlu0 %v1368, 96
    %v1395 = vpop.permute.xlu0 %1394
    %1396 = vrot.lane.b32.xlu0 %v1369, 96
    %v1397 = vpop.permute.xlu0 %1396
    %1398 = vrot.lane.b32.xlu0 %v1370, 96
    %v1399 = vpop.permute.xlu0 %1398
    %1400 = vrot.lane.b32.xlu0 %v1371, 96
    %v1401 = vpop.permute.xlu0 %1400
    %1402 = vrot.lane.b32.xlu0 %v1372, 96
    %v1403 = vpop.permute.xlu0 %1402
    %1404 = vrot.lane.b32.xlu0 %v1373, 96
    %v1405 = vpop.permute.xlu0 %1404
    %1406 = vrot.lane.b32.xlu0 %v1374, 96
    %v1407 = vpop.permute.xlu0 %1406
    %1408 = vrot.lane.b32.xlu0 %v1375, 96
    %v1409 = vpop.permute.xlu0 %1408
    %1410 = vrot.lane.b32.xlu0 %v1376, 96
    %v1411 = vpop.permute.xlu0 %1410
    %1412 = vrot.lane.b32.xlu0 %v1377, 96
    %v1413 = vpop.permute.xlu0 %1412
    %v1414 = vsel %vm459, %v1391, %v1393
    %v1415 = vsel %vm459, %v1393, %v1395
    %v1416 = vsel %vm459, %v1397, %v1399
    %v1417 = vsel %vm459, %v1399, %v1401
    %v1418 = vsel %vm459, %v1403, %v1405
    %v1419 = vsel %vm459, %v1405, %v1407
    %v1420 = vsel %vm459, %v1409, %v1411
    %v1421 = vsel %vm459, %v1411, %v1413
    %v1434 = vadd.f32 %v1346, %v1414
    %v1435 = vadd.f32 %v1347, %v1415
    %v1436 = vadd.f32 %v1348, %v1395
    %v1437 = vadd.f32 %v1349, %v1416
    %v1438 = vadd.f32 %v1350, %v1417
    %v1439 = vadd.f32 %v1351, %v1401
    %v1440 = vadd.f32 %v1352, %v1418
    %v1441 = vadd.f32 %v1353, %v1419
    %v1442 = vadd.f32 %v1354, %v1407
    %v1443 = vadd.f32 %v1355, %v1420
    %v1444 = vadd.f32 %v1356, %v1421
    %v1445 = vadd.f32 %v1357, %v1413
    %1446 = vset.pattern.permute.xlu0 16
    %1447 = vperm.xlu0 %1446, %v36
    %v1448 = vpop.permute.xlu0 %1447
    %1450 = vset.pattern.permute.xlu0 16
    %1451 = vperm.xlu0 %1450, %v37
    %v1452 = vpop.permute.xlu0 %1451
    %v1454 = vmul.f32 %v247, %v1448
    %v1455 = vmul.f32 %v231, %v1448
    %v1456 = vmul.f32 %v251, %v1448
    %v1457 = vmul.f32 %v248, %v1452
    %v1458 = vmul.f32 %v232, %v1452
    %v1459 = vmul.f32 %v252, %v1452
    %v1460 = vmul.f32 %v249, %v1448
    %v1461 = vmul.f32 %v233, %v1448
    %v1462 = vmul.f32 %v253, %v1448
    %v1463 = vmul.f32 %v250, %v1452
    %v1464 = vmul.f32 %v234, %v1452
    %v1465 = vmul.f32 %v254, %v1452
    %1478 = vrot.lane.b32.xlu0 %v1454, 64
    %v1479 = vpop.permute.xlu0 %1478
    %1480 = vrot.lane.b32.xlu0 %v1455, 64
    %v1481 = vpop.permute.xlu0 %1480
    %1482 = vrot.lane.b32.xlu0 %v1456, 64
    %v1483 = vpop.permute.xlu0 %1482
    %1484 = vrot.lane.b32.xlu0 %v1457, 64
    %v1485 = vpop.permute.xlu0 %1484
    %1486 = vrot.lane.b32.xlu0 %v1458, 64
    %v1487 = vpop.permute.xlu0 %1486
    %1488 = vrot.lane.b32.xlu0 %v1459, 64
    %v1489 = vpop.permute.xlu0 %1488
    %1490 = vrot.lane.b32.xlu0 %v1460, 64
    %v1491 = vpop.permute.xlu0 %1490
    %1492 = vrot.lane.b32.xlu0 %v1461, 64
    %v1493 = vpop.permute.xlu0 %1492
    %1494 = vrot.lane.b32.xlu0 %v1462, 64
    %v1495 = vpop.permute.xlu0 %1494
    %1496 = vrot.lane.b32.xlu0 %v1463, 64
    %v1497 = vpop.permute.xlu0 %1496
    %1498 = vrot.lane.b32.xlu0 %v1464, 64
    %v1499 = vpop.permute.xlu0 %1498
    %1500 = vrot.lane.b32.xlu0 %v1465, 64
    %v1501 = vpop.permute.xlu0 %1500
    %v1502 = vsel %vm1279, %v1479, %v1481
    %v1503 = vsel %vm1279, %v1481, %v1483
    %v1504 = vsel %vm1279, %v1485, %v1487
    %v1505 = vsel %vm1279, %v1487, %v1489
    %v1506 = vsel %vm1279, %v1491, %v1493
    %v1507 = vsel %vm1279, %v1493, %v1495
    %v1508 = vsel %vm1279, %v1497, %v1499
    %v1509 = vsel %vm1279, %v1499, %v1501
    %v1522 = vadd.f32 %v1434, %v1502
    %v1523 = vadd.f32 %v1435, %v1503
    %v1524 = vadd.f32 %v1436, %v1483
    %v1525 = vadd.f32 %v1437, %v1504
    %v1526 = vadd.f32 %v1438, %v1505
    %v1527 = vadd.f32 %v1439, %v1489
    %v1528 = vadd.f32 %v1440, %v1506
    %v1529 = vadd.f32 %v1441, %v1507
    %v1530 = vadd.f32 %v1442, %v1495
    %v1531 = vadd.f32 %v1443, %v1508
    %v1532 = vadd.f32 %v1444, %v1509
    %v1533 = vadd.f32 %v1445, %v1501
    %1546 = vrot.lane.b32.xlu0 %v1522, 126
    %v1547 = vpop.permute.xlu0 %1546
    %1548 = vrot.lane.b32.xlu0 %v1523, 126
    %v1549 = vpop.permute.xlu0 %1548
    %1550 = vrot.lane.b32.xlu0 %v1524, 126
    %v1551 = vpop.permute.xlu0 %1550
    %1552 = vrot.lane.b32.xlu0 %v1525, 126
    %v1553 = vpop.permute.xlu0 %1552
    %1554 = vrot.lane.b32.xlu0 %v1526, 126
    %v1555 = vpop.permute.xlu0 %1554
    %1556 = vrot.lane.b32.xlu0 %v1527, 126
    %v1557 = vpop.permute.xlu0 %1556
    %1558 = vrot.lane.b32.xlu0 %v1528, 126
    %v1559 = vpop.permute.xlu0 %1558
    %1560 = vrot.lane.b32.xlu0 %v1529, 126
    %v1561 = vpop.permute.xlu0 %1560
    %1562 = vrot.lane.b32.xlu0 %v1530, 126
    %v1563 = vpop.permute.xlu0 %1562
    %1564 = vrot.lane.b32.xlu0 %v1531, 126
    %v1565 = vpop.permute.xlu0 %1564
    %1566 = vrot.lane.b32.xlu0 %v1532, 126
    %v1567 = vpop.permute.xlu0 %1566
    %1568 = vrot.lane.b32.xlu0 %v1533, 126
    %v1569 = vpop.permute.xlu0 %1568
    %vm1570 = vcmask 1031168
    %v1571 = vsel %vm1570, %v1547, %v1549
    %v1572 = vsel %vm1570, %v1549, %v1551
    %v1573 = vsel %vm1570, %v1553, %v1555
    %v1574 = vsel %vm1570, %v1555, %v1557
    %v1575 = vsel %vm1570, %v1559, %v1561
    %v1576 = vsel %vm1570, %v1561, %v1563
    %v1577 = vsel %vm1570, %v1565, %v1567
    %v1578 = vsel %vm1570, %v1567, %v1569
    %v1587 = vadd.f32 %v1318, %v1571
    %v1588 = vadd.f32 %v1319, %v1572
    %v1589 = vadd.f32 %v1320, %v1573
    %v1590 = vadd.f32 %v1321, %v1574
    %v1591 = vadd.f32 %v1322, %v1575
    %v1592 = vadd.f32 %v1323, %v1576
    %v1593 = vadd.f32 %v1324, %v1577
    %v1594 = vadd.f32 %v1325, %v1578
    %1595 = vset.pattern.permute.xlu0 11
    %1596 = vperm.xlu0 %1595, %v36
    %v1597 = vpop.permute.xlu0 %1596
    %1599 = vset.pattern.permute.xlu0 11
    %1600 = vperm.xlu0 %1599, %v37
    %v1601 = vpop.permute.xlu0 %1600
    %v1603 = vmul.f32 %v247, %v1597
    %v1604 = vmul.f32 %v231, %v1597
    %v1605 = vmul.f32 %v251, %v1597
    %v1606 = vmul.f32 %v248, %v1601
    %v1607 = vmul.f32 %v232, %v1601
    %v1608 = vmul.f32 %v252, %v1601
    %v1609 = vmul.f32 %v249, %v1597
    %v1610 = vmul.f32 %v233, %v1597
    %v1611 = vmul.f32 %v253, %v1597
    %v1612 = vmul.f32 %v250, %v1601
    %v1613 = vmul.f32 %v234, %v1601
    %v1614 = vmul.f32 %v254, %v1601
    %v1615 = vadd.f32 %v1603, 0.0
    %v1616 = vadd.f32 %v1604, 0.0
    %v1617 = vadd.f32 %v1605, 0.0
    %v1618 = vadd.f32 %v1606, 0.0
    %v1619 = vadd.f32 %v1607, 0.0
    %v1620 = vadd.f32 %v1608, 0.0
    %v1621 = vadd.f32 %v1609, 0.0
    %v1622 = vadd.f32 %v1610, 0.0
    %v1623 = vadd.f32 %v1611, 0.0
    %v1624 = vadd.f32 %v1612, 0.0
    %v1625 = vadd.f32 %v1613, 0.0
    %v1626 = vadd.f32 %v1614, 0.0
    %1627 = vset.pattern.permute.xlu0 14
    %1628 = vperm.xlu0 %1627, %v36
    %v1629 = vpop.permute.xlu0 %1628
    %1631 = vset.pattern.permute.xlu0 14
    %1632 = vperm.xlu0 %1631, %v37
    %v1633 = vpop.permute.xlu0 %1632
    %v1635 = vmul.f32 %v247, %v1629
    %v1636 = vmul.f32 %v231, %v1629
    %v1637 = vmul.f32 %v251, %v1629
    %v1638 = vmul.f32 %v248, %v1633
    %v1639 = vmul.f32 %v232, %v1633
    %v1640 = vmul.f32 %v252, %v1633
    %v1641 = vmul.f32 %v249, %v1629
    %v1642 = vmul.f32 %v233, %v1629
    %v1643 = vmul.f32 %v253, %v1629
    %v1644 = vmul.f32 %v250, %v1633
    %v1645 = vmul.f32 %v234, %v1633
    %v1646 = vmul.f32 %v254, %v1633
    %1659 = vrot.lane.b32.xlu0 %v1635, 96
    %v1660 = vpop.permute.xlu0 %1659
    %1661 = vrot.lane.b32.xlu0 %v1636, 96
    %v1662 = vpop.permute.xlu0 %1661
    %1663 = vrot.lane.b32.xlu0 %v1637, 96
    %v1664 = vpop.permute.xlu0 %1663
    %1665 = vrot.lane.b32.xlu0 %v1638, 96
    %v1666 = vpop.permute.xlu0 %1665
    %1667 = vrot.lane.b32.xlu0 %v1639, 96
    %v1668 = vpop.permute.xlu0 %1667
    %1669 = vrot.lane.b32.xlu0 %v1640, 96
    %v1670 = vpop.permute.xlu0 %1669
    %1671 = vrot.lane.b32.xlu0 %v1641, 96
    %v1672 = vpop.permute.xlu0 %1671
    %1673 = vrot.lane.b32.xlu0 %v1642, 96
    %v1674 = vpop.permute.xlu0 %1673
    %1675 = vrot.lane.b32.xlu0 %v1643, 96
    %v1676 = vpop.permute.xlu0 %1675
    %1677 = vrot.lane.b32.xlu0 %v1644, 96
    %v1678 = vpop.permute.xlu0 %1677
    %1679 = vrot.lane.b32.xlu0 %v1645, 96
    %v1680 = vpop.permute.xlu0 %1679
    %1681 = vrot.lane.b32.xlu0 %v1646, 96
    %v1682 = vpop.permute.xlu0 %1681
    %v1683 = vsel %vm459, %v1660, %v1662
    %v1684 = vsel %vm459, %v1662, %v1664
    %v1685 = vsel %vm459, %v1666, %v1668
    %v1686 = vsel %vm459, %v1668, %v1670
    %v1687 = vsel %vm459, %v1672, %v1674
    %v1688 = vsel %vm459, %v1674, %v1676
    %v1689 = vsel %vm459, %v1678, %v1680
    %v1690 = vsel %vm459, %v1680, %v1682
    %v1703 = vadd.f32 %v1615, %v1683
    %v1704 = vadd.f32 %v1616, %v1684
    %v1705 = vadd.f32 %v1617, %v1664
    %v1706 = vadd.f32 %v1618, %v1685
    %v1707 = vadd.f32 %v1619, %v1686
    %v1708 = vadd.f32 %v1620, %v1670
    %v1709 = vadd.f32 %v1621, %v1687
    %v1710 = vadd.f32 %v1622, %v1688
    %v1711 = vadd.f32 %v1623, %v1676
    %v1712 = vadd.f32 %v1624, %v1689
    %v1713 = vadd.f32 %v1625, %v1690
    %v1714 = vadd.f32 %v1626, %v1682
    %1715 = vset.pattern.permute.xlu0 17
    %1716 = vperm.xlu0 %1715, %v36
    %v1717 = vpop.permute.xlu0 %1716
    %1719 = vset.pattern.permute.xlu0 17
    %1720 = vperm.xlu0 %1719, %v37
    %v1721 = vpop.permute.xlu0 %1720
    %v1723 = vmul.f32 %v247, %v1717
    %v1724 = vmul.f32 %v231, %v1717
    %v1725 = vmul.f32 %v251, %v1717
    %v1726 = vmul.f32 %v248, %v1721
    %v1727 = vmul.f32 %v232, %v1721
    %v1728 = vmul.f32 %v252, %v1721
    %v1729 = vmul.f32 %v249, %v1717
    %v1730 = vmul.f32 %v233, %v1717
    %v1731 = vmul.f32 %v253, %v1717
    %v1732 = vmul.f32 %v250, %v1721
    %v1733 = vmul.f32 %v234, %v1721
    %v1734 = vmul.f32 %v254, %v1721
    %1747 = vrot.lane.b32.xlu0 %v1723, 64
    %v1748 = vpop.permute.xlu0 %1747
    %1749 = vrot.lane.b32.xlu0 %v1724, 64
    %v1750 = vpop.permute.xlu0 %1749
    %1751 = vrot.lane.b32.xlu0 %v1725, 64
    %v1752 = vpop.permute.xlu0 %1751
    %1753 = vrot.lane.b32.xlu0 %v1726, 64
    %v1754 = vpop.permute.xlu0 %1753
    %1755 = vrot.lane.b32.xlu0 %v1727, 64
    %v1756 = vpop.permute.xlu0 %1755
    %1757 = vrot.lane.b32.xlu0 %v1728, 64
    %v1758 = vpop.permute.xlu0 %1757
    %1759 = vrot.lane.b32.xlu0 %v1729, 64
    %v1760 = vpop.permute.xlu0 %1759
    %1761 = vrot.lane.b32.xlu0 %v1730, 64
    %v1762 = vpop.permute.xlu0 %1761
    %1763 = vrot.lane.b32.xlu0 %v1731, 64
    %v1764 = vpop.permute.xlu0 %1763
    %1765 = vrot.lane.b32.xlu0 %v1732, 64
    %v1766 = vpop.permute.xlu0 %1765
    %1767 = vrot.lane.b32.xlu0 %v1733, 64
    %v1768 = vpop.permute.xlu0 %1767
    %1769 = vrot.lane.b32.xlu0 %v1734, 64
    %v1770 = vpop.permute.xlu0 %1769
    %v1771 = vsel %vm1279, %v1748, %v1750
    %v1772 = vsel %vm1279, %v1750, %v1752
    %v1773 = vsel %vm1279, %v1754, %v1756
    %v1774 = vsel %vm1279, %v1756, %v1758
    %v1775 = vsel %vm1279, %v1760, %v1762
    %v1776 = vsel %vm1279, %v1762, %v1764
    %v1777 = vsel %vm1279, %v1766, %v1768
    %v1778 = vsel %vm1279, %v1768, %v1770
    %v1791 = vadd.f32 %v1703, %v1771
    %v1792 = vadd.f32 %v1704, %v1772
    %v1793 = vadd.f32 %v1705, %v1752
    %v1794 = vadd.f32 %v1706, %v1773
    %v1795 = vadd.f32 %v1707, %v1774
    %v1796 = vadd.f32 %v1708, %v1758
    %v1797 = vadd.f32 %v1709, %v1775
    %v1798 = vadd.f32 %v1710, %v1776
    %v1799 = vadd.f32 %v1711, %v1764
    %v1800 = vadd.f32 %v1712, %v1777
    %v1801 = vadd.f32 %v1713, %v1778
    %v1802 = vadd.f32 %v1714, %v1770
    %vm1803 = vcmp.lt.s32.totalorder %v280, 14
    %vm1804 = vcmp.lt.s32.totalorder %v281, 14
    %v1805 = vsel %vm1803, 1, 0
    %v1806 = vsel %vm1804, 1, 0
    %vm1807 = vcmp.eq.s32.totalorder %v1805, 1
    %vm1808 = vcmp.eq.s32.totalorder %v1806, 1
    %1821 = vrot.lane.b32.xlu0 %v1791, 124
    %v1822 = vpop.permute.xlu0 %1821
    %1823 = vrot.lane.b32.xlu0 %v1792, 124
    %v1824 = vpop.permute.xlu0 %1823
    %1825 = vrot.lane.b32.xlu0 %v1793, 124
    %v1826 = vpop.permute.xlu0 %1825
    %1827 = vrot.lane.b32.xlu0 %v1794, 124
    %v1828 = vpop.permute.xlu0 %1827
    %1829 = vrot.lane.b32.xlu0 %v1795, 124
    %v1830 = vpop.permute.xlu0 %1829
    %1831 = vrot.lane.b32.xlu0 %v1796, 124
    %v1832 = vpop.permute.xlu0 %1831
    %1833 = vrot.lane.b32.xlu0 %v1797, 124
    %v1834 = vpop.permute.xlu0 %1833
    %1835 = vrot.lane.b32.xlu0 %v1798, 124
    %v1836 = vpop.permute.xlu0 %1835
    %1837 = vrot.lane.b32.xlu0 %v1799, 124
    %v1838 = vpop.permute.xlu0 %1837
    %1839 = vrot.lane.b32.xlu0 %v1800, 124
    %v1840 = vpop.permute.xlu0 %1839
    %1841 = vrot.lane.b32.xlu0 %v1801, 124
    %v1842 = vpop.permute.xlu0 %1841
    %1843 = vrot.lane.b32.xlu0 %v1802, 124
    %v1844 = vpop.permute.xlu0 %1843
    %vm1845 = vcmask 1014784
    %v1846 = vsel %vm1845, %v1822, %v1824
    %v1847 = vsel %vm1845, %v1824, %v1826
    %v1848 = vsel %vm1845, %v1828, %v1830
    %v1849 = vsel %vm1845, %v1830, %v1832
    %v1850 = vsel %vm1845, %v1834, %v1836
    %v1851 = vsel %vm1845, %v1836, %v1838
    %v1852 = vsel %vm1845, %v1840, %v1842
    %v1853 = vsel %vm1845, %v1842, %v1844
    %v1862 = vsel %vm1807, %v1846, 0.0
    %v1863 = vsel %vm1808, %v1847, 0.0
    %v1864 = vsel %vm1807, %v1848, 0.0
    %v1865 = vsel %vm1808, %v1849, 0.0
    %v1866 = vsel %vm1807, %v1850, 0.0
    %v1867 = vsel %vm1808, %v1851, 0.0
    %v1868 = vsel %vm1807, %v1852, 0.0
    %v1869 = vsel %vm1808, %v1853, 0.0
    %v1870 = vadd.f32 %v1587, %v1862
    %v1871 = vadd.f32 %v1588, %v1863
    %v1872 = vadd.f32 %v1589, %v1864
    %v1873 = vadd.f32 %v1590, %v1865
    %v1874 = vadd.f32 %v1591, %v1866
    %v1875 = vadd.f32 %v1592, %v1867
    %v1876 = vadd.f32 %v1593, %v1868
    %v1877 = vadd.f32 %v1594, %v1869
    %1878 = vset.pattern.permute.xlu0 20
    %1879 = vperm.xlu0 %1878, %v36
    %v1880 = vpop.permute.xlu0 %1879
    %1882 = vset.pattern.permute.xlu0 20
    %1883 = vperm.xlu0 %1882, %v37
    %v1884 = vpop.permute.xlu0 %1883
    %v1886 = vadd.f32 %v1111, %v1880
    %v1887 = vadd.f32 %v1112, %v1880
    %v1888 = vadd.f32 %v1113, %v1884
    %v1889 = vadd.f32 %v1114, %v1884
    %v1890 = vadd.f32 %v1115, %v1880
    %v1891 = vadd.f32 %v1116, %v1880
    %v1892 = vadd.f32 %v1117, %v1884
    %v1893 = vadd.f32 %v1118, %v1884
    %vm1894 = vcmp.ge.f32.partialorder %v1886, 0.0
    %vm1895 = vcmp.ge.f32.partialorder %v1887, 0.0
    %vm1896 = vcmp.ge.f32.partialorder %v1888, 0.0
    %vm1897 = vcmp.ge.f32.partialorder %v1889, 0.0
    %vm1898 = vcmp.ge.f32.partialorder %v1890, 0.0
    %vm1899 = vcmp.ge.f32.partialorder %v1891, 0.0
    %vm1900 = vcmp.ge.f32.partialorder %v1892, 0.0
    %vm1901 = vcmp.ge.f32.partialorder %v1893, 0.0
    %1902 = vset.pattern.permute.xlu0 21
    %1903 = vperm.xlu0 %1902, %v36
    %v1904 = vpop.permute.xlu0 %1903
    %1906 = vset.pattern.permute.xlu0 21
    %1907 = vperm.xlu0 %1906, %v37
    %v1908 = vpop.permute.xlu0 %1907
    %v1910 = vmul.f32 %v1904, %v1886
    %v1911 = vmul.f32 %v1904, %v1887
    %v1912 = vmul.f32 %v1908, %v1888
    %v1913 = vmul.f32 %v1908, %v1889
    %v1914 = vmul.f32 %v1904, %v1890
    %v1915 = vmul.f32 %v1904, %v1891
    %v1916 = vmul.f32 %v1908, %v1892
    %v1917 = vmul.f32 %v1908, %v1893
    %v1918 = vsel %vm1894, %v1886, %v1910
    %v1919 = vsel %vm1895, %v1887, %v1911
    %v1920 = vsel %vm1896, %v1888, %v1912
    %v1921 = vsel %vm1897, %v1889, %v1913
    %v1922 = vsel %vm1898, %v1890, %v1914
    %v1923 = vsel %vm1899, %v1891, %v1915
    %v1924 = vsel %vm1900, %v1892, %v1916
    %v1925 = vsel %vm1901, %v1893, %v1917
    %1926 = vset.pattern.permute.xlu0 22
    %1927 = vperm.xlu0 %1926, %v36
    %v1928 = vpop.permute.xlu0 %1927
    %1930 = vset.pattern.permute.xlu0 22
    %1931 = vperm.xlu0 %1930, %v37
    %v1932 = vpop.permute.xlu0 %1931
    %v1934 = vadd.f32 %v1870, %v1928
    %v1935 = vadd.f32 %v1871, %v1928
    %v1936 = vadd.f32 %v1872, %v1932
    %v1937 = vadd.f32 %v1873, %v1932
    %v1938 = vadd.f32 %v1874, %v1928
    %v1939 = vadd.f32 %v1875, %v1928
    %v1940 = vadd.f32 %v1876, %v1932
    %v1941 = vadd.f32 %v1877, %v1932
    %vm1942 = vcmp.ge.f32.partialorder %v1934, 0.0
    %vm1943 = vcmp.ge.f32.partialorder %v1935, 0.0
    %vm1944 = vcmp.ge.f32.partialorder %v1936, 0.0
    %vm1945 = vcmp.ge.f32.partialorder %v1937, 0.0
    %vm1946 = vcmp.ge.f32.partialorder %v1938, 0.0
    %vm1947 = vcmp.ge.f32.partialorder %v1939, 0.0
    %vm1948 = vcmp.ge.f32.partialorder %v1940, 0.0
    %vm1949 = vcmp.ge.f32.partialorder %v1941, 0.0
    %1950 = vset.pattern.permute.xlu0 23
    %1951 = vperm.xlu0 %1950, %v36
    %v1952 = vpop.permute.xlu0 %1951
    %1954 = vset.pattern.permute.xlu0 23
    %1955 = vperm.xlu0 %1954, %v37
    %v1956 = vpop.permute.xlu0 %1955
    %v1958 = vmul.f32 %v1952, %v1934
    %v1959 = vmul.f32 %v1952, %v1935
    %v1960 = vmul.f32 %v1956, %v1936
    %v1961 = vmul.f32 %v1956, %v1937
    %v1962 = vmul.f32 %v1952, %v1938
    %v1963 = vmul.f32 %v1952, %v1939
    %v1964 = vmul.f32 %v1956, %v1940
    %v1965 = vmul.f32 %v1956, %v1941
    %v1966 = vsel %vm1942, %v1934, %v1958
    %v1967 = vsel %vm1943, %v1935, %v1959
    %v1968 = vsel %vm1944, %v1936, %v1960
    %v1969 = vsel %vm1945, %v1937, %v1961
    %v1970 = vsel %vm1946, %v1938, %v1962
    %v1971 = vsel %vm1947, %v1939, %v1963
    %v1972 = vsel %vm1948, %v1940, %v1964
    %v1973 = vsel %vm1949, %v1941, %v1965
    %v1974 = vld [vmem:[%s3] sm:$0xff]
    %v1975 = vpack.c.bf16 %v1974, %v1974
    %v1976 = vld [vmem:[%s4] sm:$0xff]
    %v1977 = vld [vmem:[%s4 + $0x8] sm:$0xff]
    %v1978 = vld [vmem:[%s4 + $0x10] sm:$0xff]
    %v1979 = vld [vmem:[%s4 + $0x18] sm:$0xff]
    %v1980 = vpack.c.bf16 %v1920, %v1918
    %v1981 = vpack.c.bf16 %v1921, %v1919
    %v1982 = vpack.c.bf16 %v1968, %v1966
    %v1983 = vpack.c.bf16 %v1969, %v1967
    %v1985 = vsel %vm53, %v1975, 0
    %1987 = vmatprep.subr.bf16.mxu0 %v1981
    %1988 = vmatpush1.bf16.msra.mxu0 %v1980
    %1989 = vmatprep.subr.bf16.mxu0 %v1983
    %1990 = vmatpush1.bf16.msra.mxu0 %v1982
    %1991 = vmatprep.subr.bf16.mxu0 0
    %1992 = vmatpush1.bf16.msra.mxu0 0
    %1993 = vmatprep.subr.bf16.mxu0 0
    %1994 = vmatpush1.bf16.msra.mxu0 0
    %1995 = vmatprep.subr.bf16.mxu0 0
    %1996 = vmatpush1.bf16.msra.mxu0 0
    %1997 = vmatprep.subr.bf16.mxu0 0
    %1998 = vmatpush1.bf16.msra.mxu0 0
    %1999 = vmatprep.subr.bf16.mxu0 0
    %2000 = vmatpush1.bf16.msra.mxu0 0
    %2001 = vmatprep.subr.bf16.mxu0 0
    %2002 = vmatpush1.bf16.msra.mxu0 0
    %2003 = vmatprep.subr.bf16.mxu0 0
    %2004 = vmatpush1.bf16.msra.mxu0 0
    %2005 = vmatprep.subr.bf16.mxu0 0
    %2006 = vmatpush1.bf16.msra.mxu0 0
    %2007 = vmatprep.subr.bf16.mxu0 0
    %2008 = vmatpush1.bf16.msra.mxu0 0
    %2009 = vmatprep.subr.bf16.mxu0 0
    %2010 = vmatpush1.bf16.msra.mxu0 0
    %2011 = vmatprep.subr.bf16.mxu0 0
    %2012 = vmatpush1.bf16.msra.mxu0 0
    %2013 = vmatprep.subr.bf16.mxu0 0
    %2014 = vmatpush1.bf16.msra.mxu0 0
    %2015 = vmatprep.subr.bf16.mxu0 0
    %2016 = vmatpush1.bf16.msra.mxu0 0
    %2017 = vmatprep.subr.bf16.mxu0 0
    %2018 = vmatpush1.bf16.msra.mxu0 0
    %2019 = vmatprep.mubr.bf16.mxu0 0
    %2020 = vmatmul.mubr.bf16.gmra.mrb[0].mxu0 %v1985
    %v2021 = vpop.f32.mrb[0].mxu0
    %v2022 = vadd.f32 0.0, %v2021
    %v2023 = vpop.f32.mrb[0].mxu0
    %v2024 = vadd.f32 0.0, %v2023
    %v2025 = vpop.f32.mrb[0].mxu0
    %v2026 = vpop.f32.mrb[0].mxu0
    %2027 = vdwg.mxu0
    %v2028 = vadd.f32 %v2022, %v2024
    %2029 = vadd.xlane.f32.xlu0 %v2028
    %v2030 = vpop.xlane.xlu0 %2029
    %v2031 = vmul.f32 %v2030, 0.00390625
    %v2032 = vadd.f32 %v2031, %v1974
    %v2033 = vmax.f32 %v2032, 0.0
    %v2034 = vlaneseq
    %v2035 = vshrl.u32 %v2034, 7
    %v2036 = vsub.s32 0, %v2035
    %v2037 = vrot.slane %v2033, %v2036
    %2039 = vrot.lane.b32.xlu0 %v2037, 96
    %v2040 = vpop.permute.xlu0 %2039
    %v2042 = vmul.f32 %v1976, %v2040
    %v2043 = vmul.f32 %v1977, %v2040
    %v2044 = vmul.f32 %v1978, %v2040
    %v2045 = vmul.f32 %v1979, %v2040
    %2050 = vrot.lane.b32.xlu0 %v2042, 2
    %v2051 = vpop.permute.xlu0 %2050
    %2052 = vrot.lane.b32.xlu0 %v2043, 2
    %v2053 = vpop.permute.xlu0 %2052
    %2054 = vrot.lane.b32.xlu0 %v2044, 2
    %v2055 = vpop.permute.xlu0 %2054
    %2056 = vrot.lane.b32.xlu0 %v2045, 2
    %v2057 = vpop.permute.xlu0 %2056
    %v2062 = vadd.f32 %v1976, %v2051
    %v2063 = vadd.f32 %v1977, %v2053
    %v2064 = vadd.f32 %v1978, %v2055
    %v2065 = vadd.f32 %v1979, %v2057
    %v2066 = vlaneseq
    %v2067 = vshrl.u32 %v2066, 7
    %v2068 = vsub.s32 1, %v2067
    %v2069 = vrot.slane %v2033, %v2068
    %2071 = vrot.lane.b32.xlu0 %v2069, 97
    %v2072 = vpop.permute.xlu0 %2071
    %v2074 = vmul.f32 %v1976, %v2072
    %v2075 = vmul.f32 %v1977, %v2072
    %v2076 = vmul.f32 %v1978, %v2072
    %v2077 = vmul.f32 %v1979, %v2072
    %2082 = vrot.lane.b32.xlu0 %v2074, 1
    %v2083 = vpop.permute.xlu0 %2082
    %2084 = vrot.lane.b32.xlu0 %v2075, 1
    %v2085 = vpop.permute.xlu0 %2084
    %2086 = vrot.lane.b32.xlu0 %v2076, 1
    %v2087 = vpop.permute.xlu0 %2086
    %2088 = vrot.lane.b32.xlu0 %v2077, 1
    %v2089 = vpop.permute.xlu0 %2088
    %v2094 = vadd.f32 %v2062, %v2083
    %v2095 = vadd.f32 %v2063, %v2085
    %v2096 = vadd.f32 %v2064, %v2087
    %v2097 = vadd.f32 %v2065, %v2089
    %v2098 = vmul.f32 %v2094, 0.5
    %v2099 = vmul.f32 %v2095, 0.5
    %v2100 = vmul.f32 %v2096, 0.5
    %v2101 = vmul.f32 %v2097, 0.5
    %v2102 = vtanh.pop %v2098
    %v2103 = vtanh.pop %v2099
    %v2104 = vtanh.pop %v2100
    %v2105 = vtanh.pop %v2101
    %v2106 = vadd.f32 %v2102, 1.0
    %v2107 = vadd.f32 %v2103, 1.0
    %v2108 = vadd.f32 %v2104, 1.0
    %v2109 = vadd.f32 %v2105, 1.0
    %v2110 = vmul.f32 %v2106, 0.5
    %v2111 = vmul.f32 %v2107, 0.5
    %v2112 = vmul.f32 %v2108, 0.5
    %v2113 = vmul.f32 %v2109, 0.5
    %2115 = vset.pattern.permute.xlu0 2
    %2116 = vperm.xlu0 %2115, %v2110
    %v2117 = vpop.permute.xlu0 %2116
    %2120 = vset.pattern.permute.xlu0 2
    %2121 = vperm.xlu0 %2120, %v2111
    %v2122 = vpop.permute.xlu0 %2121
    %2125 = vset.pattern.permute.xlu0 2
    %2126 = vperm.xlu0 %2125, %v2112
    %v2127 = vpop.permute.xlu0 %2126
    %2130 = vset.pattern.permute.xlu0 2
    %2131 = vperm.xlu0 %2130, %v2113
    %v2132 = vpop.permute.xlu0 %2131
    %v2134 = vmul.f32 %v1918, %v2117
    %v2135 = vmul.f32 %v1919, %v2117
    %v2136 = vmul.f32 %v1920, %v2122
    %v2137 = vmul.f32 %v1921, %v2122
    %v2138 = vmul.f32 %v1966, %v2127
    %v2139 = vmul.f32 %v1967, %v2127
    %v2140 = vmul.f32 %v1968, %v2132
    %v2141 = vmul.f32 %v1969, %v2132
    %v2142 = vadd.f32 %v2134, %v41
    %v2143 = vadd.f32 %v2135, %v42
    %v2144 = vadd.f32 %v2136, %v43
    %v2145 = vadd.f32 %v2137, %v44
    %v2146 = vadd.f32 %v2138, %v45
    %v2147 = vadd.f32 %v2139, %v46
    %v2148 = vadd.f32 %v2140, %v47
    %v2149 = vadd.f32 %v2141, %v48
    %2150 = vst [vmem:[#allocation5] sm:$0xff] %v2142
    %2151 = vst [vmem:[#allocation5 + $0x8] sm:$0xff] %v2143
    %2152 = vst [vmem:[#allocation5 + $0x10] sm:$0xff] %v2144
    %2153 = vst [vmem:[#allocation5 + $0x18] sm:$0xff] %v2145
    %2154 = vst [vmem:[#allocation5 + $0x20] sm:$0xff] %v2146
    %2155 = vst [vmem:[#allocation5 + $0x28] sm:$0xff] %v2147
    %2156 = vst [vmem:[#allocation5 + $0x30] sm:$0xff] %v2148
    %2157 = vst [vmem:[#allocation5 + $0x38] sm:$0xff] %v2149
    %v2158 = vpack.c.bf16 %v1924, %v1922
    %v2159 = vpack.c.bf16 %v1925, %v1923
    %v2160 = vpack.c.bf16 %v1972, %v1970
    %v2161 = vpack.c.bf16 %v1973, %v1971
    %2162 = vmatprep.subr.bf16.mxu0 %v2159
    %2163 = vmatpush1.bf16.msra.mxu0 %v2158
    %2164 = vmatprep.subr.bf16.mxu0 %v2161
    %2165 = vmatpush1.bf16.msra.mxu0 %v2160
    %2166 = vmatprep.subr.bf16.mxu0 0
    %2167 = vmatpush1.bf16.msra.mxu0 0
    %2168 = vmatprep.subr.bf16.mxu0 0
    %2169 = vmatpush1.bf16.msra.mxu0 0
    %2170 = vmatprep.subr.bf16.mxu0 0
    %2171 = vmatpush1.bf16.msra.mxu0 0
    %2172 = vmatprep.subr.bf16.mxu0 0
    %2173 = vmatpush1.bf16.msra.mxu0 0
    %2174 = vmatprep.subr.bf16.mxu0 0
    %2175 = vmatpush1.bf16.msra.mxu0 0
    %2176 = vmatprep.subr.bf16.mxu0 0
    %2177 = vmatpush1.bf16.msra.mxu0 0
    %2178 = vmatprep.subr.bf16.mxu0 0
    %2179 = vmatpush1.bf16.msra.mxu0 0
    %2180 = vmatprep.subr.bf16.mxu0 0
    %2181 = vmatpush1.bf16.msra.mxu0 0
    %2182 = vmatprep.subr.bf16.mxu0 0
    %2183 = vmatpush1.bf16.msra.mxu0 0
    %2184 = vmatprep.subr.bf16.mxu0 0
    %2185 = vmatpush1.bf16.msra.mxu0 0
    %2186 = vmatprep.subr.bf16.mxu0 0
    %2187 = vmatpush1.bf16.msra.mxu0 0
    %2188 = vmatprep.subr.bf16.mxu0 0
    %2189 = vmatpush1.bf16.msra.mxu0 0
    %2190 = vmatprep.subr.bf16.mxu0 0
    %2191 = vmatpush1.bf16.msra.mxu0 0
    %2192 = vmatprep.subr.bf16.mxu0 0
    %2193 = vmatpush1.bf16.msra.mxu0 0
    %2194 = vmatprep.mubr.bf16.mxu0 0
    %2195 = vmatmul.mubr.bf16.gmra.mrb[0].mxu0 %v1985
    %v2196 = vpop.f32.mrb[0].mxu0
    %v2197 = vadd.f32 0.0, %v2196
    %v2198 = vpop.f32.mrb[0].mxu0
    %v2199 = vadd.f32 0.0, %v2198
    %v2200 = vpop.f32.mrb[0].mxu0
    %v2201 = vpop.f32.mrb[0].mxu0
    %2202 = vdwg.mxu0
    %v2203 = vadd.f32 %v2197, %v2199
    %2204 = vadd.xlane.f32.xlu0 %v2203
    %v2205 = vpop.xlane.xlu0 %2204
    %v2206 = vmul.f32 %v2205, 0.00390625
    %v2207 = vadd.f32 %v2206, %v1974
    %v2208 = vmax.f32 %v2207, 0.0
    %v2209 = vlaneseq
    %v2210 = vshrl.u32 %v2209, 7
    %v2211 = vsub.s32 0, %v2210
    %v2212 = vrot.slane %v2208, %v2211
    %2214 = vrot.lane.b32.xlu0 %v2212, 96
    %v2215 = vpop.permute.xlu0 %2214
    %v2217 = vmul.f32 %v1976, %v2215
    %v2218 = vmul.f32 %v1977, %v2215
    %v2219 = vmul.f32 %v1978, %v2215
    %v2220 = vmul.f32 %v1979, %v2215
    %2225 = vrot.lane.b32.xlu0 %v2217, 2
    %v2226 = vpop.permute.xlu0 %2225
    %2227 = vrot.lane.b32.xlu0 %v2218, 2
    %v2228 = vpop.permute.xlu0 %2227
    %2229 = vrot.lane.b32.xlu0 %v2219, 2
    %v2230 = vpop.permute.xlu0 %2229
    %2231 = vrot.lane.b32.xlu0 %v2220, 2
    %v2232 = vpop.permute.xlu0 %2231
    %v2237 = vadd.f32 %v1976, %v2226
    %v2238 = vadd.f32 %v1977, %v2228
    %v2239 = vadd.f32 %v1978, %v2230
    %v2240 = vadd.f32 %v1979, %v2232
    %v2241 = vlaneseq
    %v2242 = vshrl.u32 %v2241, 7
    %v2243 = vsub.s32 1, %v2242
    %v2244 = vrot.slane %v2208, %v2243
    %2246 = vrot.lane.b32.xlu0 %v2244, 97
    %v2247 = vpop.permute.xlu0 %2246
    %v2249 = vmul.f32 %v1976, %v2247
    %v2250 = vmul.f32 %v1977, %v2247
    %v2251 = vmul.f32 %v1978, %v2247
    %v2252 = vmul.f32 %v1979, %v2247
    %2257 = vrot.lane.b32.xlu0 %v2249, 1
    %v2258 = vpop.permute.xlu0 %2257
    %2259 = vrot.lane.b32.xlu0 %v2250, 1
    %v2260 = vpop.permute.xlu0 %2259
    %2261 = vrot.lane.b32.xlu0 %v2251, 1
    %v2262 = vpop.permute.xlu0 %2261
    %2263 = vrot.lane.b32.xlu0 %v2252, 1
    %v2264 = vpop.permute.xlu0 %2263
    %v2269 = vadd.f32 %v2237, %v2258
    %v2270 = vadd.f32 %v2238, %v2260
    %v2271 = vadd.f32 %v2239, %v2262
    %v2272 = vadd.f32 %v2240, %v2264
    %v2273 = vmul.f32 %v2269, 0.5
    %v2274 = vmul.f32 %v2270, 0.5
    %v2275 = vmul.f32 %v2271, 0.5
    %v2276 = vmul.f32 %v2272, 0.5
    %v2277 = vtanh.pop %v2273
    %v2278 = vtanh.pop %v2274
    %v2279 = vtanh.pop %v2275
    %v2280 = vtanh.pop %v2276
    %v2281 = vadd.f32 %v2277, 1.0
    %v2282 = vadd.f32 %v2278, 1.0
    %v2283 = vadd.f32 %v2279, 1.0
    %v2284 = vadd.f32 %v2280, 1.0
    %v2285 = vmul.f32 %v2281, 0.5
    %v2286 = vmul.f32 %v2282, 0.5
    %v2287 = vmul.f32 %v2283, 0.5
    %v2288 = vmul.f32 %v2284, 0.5
    %2290 = vset.pattern.permute.xlu0 2
    %2291 = vperm.xlu0 %2290, %v2285
    %v2292 = vpop.permute.xlu0 %2291
    %2295 = vset.pattern.permute.xlu0 2
    %2296 = vperm.xlu0 %2295, %v2286
    %v2297 = vpop.permute.xlu0 %2296
    %2300 = vset.pattern.permute.xlu0 2
    %2301 = vperm.xlu0 %2300, %v2287
    %v2302 = vpop.permute.xlu0 %2301
    %2305 = vset.pattern.permute.xlu0 2
    %2306 = vperm.xlu0 %2305, %v2288
    %v2307 = vpop.permute.xlu0 %2306
    %v2309 = vmul.f32 %v1922, %v2292
    %v2310 = vmul.f32 %v1923, %v2292
    %v2311 = vmul.f32 %v1924, %v2297
    %v2312 = vmul.f32 %v1925, %v2297
    %v2313 = vmul.f32 %v1970, %v2302
    %v2314 = vmul.f32 %v1971, %v2302
    %v2315 = vmul.f32 %v1972, %v2307
    %v2316 = vmul.f32 %v1973, %v2307
    %v2317 = vld [vmem:[%s100] sm:$0xff]
    %v2318 = vld [vmem:[%s100 + $0x8] sm:$0xff]
    %v2319 = vld [vmem:[%s100 + $0x10] sm:$0xff]
    %v2320 = vld [vmem:[%s100 + $0x18] sm:$0xff]
    %v2321 = vld [vmem:[%s100 + $0x20] sm:$0xff]
    %v2322 = vld [vmem:[%s100 + $0x28] sm:$0xff]
    %v2323 = vld [vmem:[%s100 + $0x30] sm:$0xff]
    %v2324 = vld [vmem:[%s100 + $0x38] sm:$0xff]
    %v2325 = vadd.f32 %v2309, %v2317
    %v2326 = vadd.f32 %v2310, %v2318
    %v2327 = vadd.f32 %v2311, %v2319
    %v2328 = vadd.f32 %v2312, %v2320
    %v2329 = vadd.f32 %v2313, %v2321
    %v2330 = vadd.f32 %v2314, %v2322
    %v2331 = vadd.f32 %v2315, %v2323
    %v2332 = vadd.f32 %v2316, %v2324
    %s2333 = scalar_lea.vmem [#allocation5], 64
    %2334 = vst [vmem:[%s2333] sm:$0xff] %v2325
    %2335 = vst [vmem:[%s2333 + $0x8] sm:$0xff] %v2326
    %2336 = vst [vmem:[%s2333 + $0x10] sm:$0xff] %v2327
    %2337 = vst [vmem:[%s2333 + $0x18] sm:$0xff] %v2328
    %2338 = vst [vmem:[%s2333 + $0x20] sm:$0xff] %v2329
    %2339 = vst [vmem:[%s2333 + $0x28] sm:$0xff] %v2330
    %2340 = vst [vmem:[%s2333 + $0x30] sm:$0xff] %v2331
    %2341 = vst [vmem:[%s2333 + $0x38] sm:$0xff] %v2332
    // Predicated region
    $region26: #{tpu_custom_call.1} parent=1 // pred_check
      _
    $region27: #{tpu_custom_call.1} parent=1 // pred_check_branch
      %2343 = sbr.rel (0) target = $region29
    $region28: #{tpu_custom_call.1} parent=1 // pred_region
      %s2345 = ssub.s32 2048, 2048
      %2346 = vsyncadd [#allocation4], %s2345
      %s2347 = sshll.u32 [#allocation5], 4
      %s2348 = int_to_ptr.vmem [resolvable:$true] %s2347
      %2353 = dma.vmem_to_hbm [thread:$0]  %s2348, 2048, %s5, [#allocation4], 256, 256, 16
    $region29: #{tpu_custom_call.1} parent=1 // pred_fallthru
      _
    // Predicated region
    $region30: #{tpu_custom_call.1} parent=1 // pred_check
      _
    $region31: #{tpu_custom_call.1} parent=1 // pred_check_branch
      %2355 = sbr.rel (0) target = $region33
    $region32: #{tpu_custom_call.1} parent=1 // pred_region
      %2356 = dma.done [#allocation4], 2048
    $region33: #{tpu_custom_call.1} parent=1 // pred_fallthru
      _
    %2357 = vsyncpa [#allocation3], 1
    %2358 = vsyncpa [#allocation4], 1

</llo_original>
